<compile_context>
chip_gen: v7x
topology: tpu7x:2x2x1
jax: 0.10.0
libtpu: 0.0.40
codegen_flags: <defaults>
</compile_context>

<pallas_src>
import functools
import math

import jax
import jax.numpy as jnp
from jax import lax
from jax.experimental import pallas as pl
from jax.experimental.pallas import tpu as pltpu


# ----------------------------- Pallas kernel --------------------------------

def _block_kernel(xq_ref, xf_ref,
                  ln1_w_ref, ln1_b_ref,
                  wq_ref, wkv_ref,            # (C, C), (2C, C)   bf16, (out, in) orientation
                  wproj_t_ref, bproj_ref,     # (C, C) bf16, (1, C) f32
                  ln2_w_ref, ln2_b_ref,
                  wfc1_t_ref, bfc1_ref,       # (C, H) bf16, (1, H) f32
                  wfc2_t_ref, bfc2_ref,       # (H, C) bf16, (1, C) f32
                  o_ref,
                  *, num_heads, eps=1e-5):
    f32 = jnp.float32
    bf16 = jnp.bfloat16

    xq = xq_ref[0].astype(f32)          # (tq, C)  query rows / residual source
    xf = xf_ref[0].astype(f32)          # (N, C)   full sequence (for K/V)
    tq, C = xq.shape
    N = xf.shape[0]
    nh = num_heads
    hd = C // nh

    def layernorm(v, w_ref, b_ref):
        mu = jnp.mean(v, axis=-1, keepdims=True)
        var = jnp.mean((v - mu) ** 2, axis=-1, keepdims=True)   # biased, like torch LN
        return (v - mu) * lax.rsqrt(var + eps) * w_ref[...] + b_ref[...]

    # ---------------- attention ----------------
    xn1_q = layernorm(xq, ln1_w_ref, ln1_b_ref)
    xn1_f = layernorm(xf, ln1_w_ref, ln1_b_ref)

    # Q/K/V in transposed (channels, rows) layout; softmax scale already folded
    # into Wq.  Both contractions are minor/minor (A @ B^T) -> single MXU dots.
    qT = jnp.einsum('oc,qc->oq', wq_ref[...], xn1_q.astype(bf16),
                    preferred_element_type=f32)                  # (C, tq)
    kvT = jnp.einsum('oc,nc->on', wkv_ref[...], xn1_f.astype(bf16),
                     preferred_element_type=f32)                 # (2C, N)
    kT = kvT[:C]                                                 # sublane-aligned split
    vT = kvT[C:]

    # Head split along the sublane axis: (C, rows) -> (nh, hd, rows).
    # With hd % 8 == 0 this is a tile-aligned reshape (no relayout).
    qT3 = qT.reshape(nh, hd, tq)
    kT3 = kT.reshape(nh, hd, N)
    vT3 = vT.reshape(nh, hd, N)

    # scores: batched over heads, contract head_dim -> (nh, tq, N)
    s = jnp.einsum('hdq,hdk->hqk', qT3.astype(bf16), kT3.astype(bf16),
                   preferred_element_type=f32)
    s = s - jnp.max(s, axis=-1, keepdims=True)
    p = jnp.exp(s)
    p = p * pl.reciprocal(jnp.sum(p, axis=-1, keepdims=True), approx=True)

    # context in transposed layout: (nh, hd, tq) -> merge heads -> (C, tq)
    ctxT = jnp.einsum('hdk,hqk->hdq', vT3.astype(bf16), p.astype(bf16),
                      preferred_element_type=f32)
    ctxT = ctxT.reshape(C, tq)

    # proj: (tq, C) = ctx @ Wproj^T, written as a contract-dim-0 dot so no
    # explicit transpose of the context is needed.
    attn_out = jnp.einsum('cq,co->qo', ctxT.astype(bf16), wproj_t_ref[...],
                          preferred_element_type=f32) + bproj_ref[...]
    x1 = xq + attn_out                                           # residual 1 (f32)

    # ---------------- MLP ----------------
    xn2 = layernorm(x1, ln2_w_ref, ln2_b_ref)
    h1 = jnp.dot(xn2.astype(bf16), wfc1_t_ref[...],
                 preferred_element_type=f32) + bfc1_ref[...]     # (tq, H)
    # exact GELU (PyTorch nn.GELU default), f32 on the VPU
    h1 = 0.5 * h1 * (1.0 + lax.erf(h1 * (1.0 / math.sqrt(2.0))))
    h2 = jnp.dot(h1.astype(bf16), wfc2_t_ref[...],
                 preferred_element_type=f32) + bfc2_ref[...]     # (tq, C)

    o_ref[0] = (x1 + h2).astype(o_ref.dtype)


# --------------------------- Parameter preparation ---------------------------

def prepare_block_params(params, *, num_heads, matmul_dtype=jnp.bfloat16):
    """One-time prep: fold softmax scale into Wq, pre-transpose / reshape, and
    cast matmul weights to bf16 (MXU inputs).  LN params & biases stay f32."""
    _, C = params["wqkv"].shape
    H = params["wfc1"].shape[0]
    scale = (C // num_heads) ** (-0.5)
    f32 = jnp.float32
    wqkv = params["wqkv"].astype(f32)
    return {
        "ln1_w": params["ln1_w"].astype(f32).reshape(1, C),
        "ln1_b": params["ln1_b"].astype(f32).reshape(1, C),
        "wq":     (wqkv[:C] * scale).astype(matmul_dtype),       # (C, C)
        "wkv":    wqkv[C:].astype(matmul_dtype),                 # (2C, C)
        "wproj_t": params["wproj"].T.astype(matmul_dtype),       # (C, C)
        "bproj":  params["bproj"].astype(f32).reshape(1, C),
        "ln2_w":  params["ln2_w"].astype(f32).reshape(1, C),
        "ln2_b":  params["ln2_b"].astype(f32).reshape(1, C),
        "wfc1_t": params["wfc1"].T.astype(matmul_dtype),         # (C, H)
        "bfc1":   params["bfc1"].astype(f32).reshape(1, H),
        "wfc2_t": params["wfc2"].T.astype(matmul_dtype),         # (H, C)
        "bfc2":   params["bfc2"].astype(f32).reshape(1, C),
    }


# --------------------------------- Wrapper ------------------------------------

def _pick_q_tile(N):
    for t in (256, 128):                 # largest multiple-of-8 tile that divides N
        if N % t == 0:
            return t
    return N                             # small / odd N: whole sequence per step


def block_forward(x, prep, *, num_heads, q_tile=None):
    """x: (B, N, C) float32; prep: output of prepare_block_params."""
    B, N, C = x.shape
    H = prep["wfc1_t"].shape[1]
    if q_tile is None:
        q_tile = _pick_q_tile(N)
    assert N % q_tile == 0
    nq = N // q_tile

    def full(shape):
        return pl.BlockSpec(shape, lambda b, qi: (0,) * len(shape))

    kernel = functools.partial(_block_kernel, num_heads=num_heads)

    return pl.pallas_call(
        kernel,
        out_shape=jax.ShapeDtypeStruct((B, N, C), x.dtype),
        grid_spec=pltpu.PrefetchScalarGridSpec(
            num_scalar_prefetch=0,
            grid=(B, nq),
            in_specs=[
                pl.BlockSpec((1, q_tile, C), lambda b, qi: (b, qi, 0)),  # x: query rows
                pl.BlockSpec((1, N, C), lambda b, qi: (b, 0, 0)),        # x: full seq (K/V)
                full((1, C)), full((1, C)),                              # ln1 w, b
                full((C, C)),                                            # Wq (scale folded, bf16)
                full((2 * C, C)),                                        # Wkv (bf16)
                full((C, C)), full((1, C)),                              # Wproj^T, bproj
                full((1, C)), full((1, C)),                              # ln2 w, b
                full((C, H)), full((1, H)),                              # Wfc1^T, bfc1
                full((H, C)), full((1, C)),                              # Wfc2^T, bfc2
            ],
            out_specs=pl.BlockSpec((1, q_tile, C), lambda b, qi: (b, qi, 0)),
        ),
        compiler_params=pltpu.CompilerParams(
            dimension_semantics=("parallel", "parallel"),
            vmem_limit_bytes=48 * 1024 * 1024,   # headroom below v7x's 64 MiB physical VMEM
        ),
    )(x, x,
      prep["ln1_w"], prep["ln1_b"],
      prep["wq"], prep["wkv"],
      prep["wproj_t"], prep["bproj"],
      prep["ln2_w"], prep["ln2_b"],
      prep["wfc1_t"], prep["bfc1"],
      prep["wfc2_t"], prep["bfc2"])


# --------------------------- Pure-JAX reference -------------------------------

def block_reference(x, params, *, num_heads):
    B, N, C = x.shape
    hd = C // num_heads
    scale = hd ** (-0.5)

    def ln(v, w, b):
        mu = jnp.mean(v, axis=-1, keepdims=True)
        var = jnp.mean((v - mu) ** 2, axis=-1, keepdims=True)
        return (v - mu) / jnp.sqrt(var + 1e-5) * w + b

    xn = ln(x, params["ln1_w"], params["ln1_b"])
    qkv = jnp.einsum("bnc,dc->bnd", xn, params["wqkv"])           # (B, N, 3C)
    qkv = qkv.reshape(B, N, 3, num_heads, hd).transpose(2, 0, 3, 1, 4)
    q, k, v = qkv[0], qkv[1], qkv[2]                              # (B, h, N, hd)
    attn = jnp.einsum("bhnd,bhmd->bhnm", q, k) * scale
    attn = jax.nn.softmax(attn, axis=-1)
    out = jnp.einsum("bhnm,bhmd->bhnd", attn, v)
    out = out.transpose(0, 2, 1, 3).reshape(B, N, C)
    out = jnp.einsum("bnc,dc->bnd", out, params["wproj"]) + params["bproj"]
    x1 = x + out

    xn2 = ln(x1, params["ln2_w"], params["ln2_b"])
    h1 = jnp.einsum("bnc,hc->bnh", xn2, params["wfc1"]) + params["bfc1"]
    h1 = 0.5 * h1 * (1.0 + lax.erf(h1 / math.sqrt(2.0)))
    h2 = jnp.einsum("bnh,ch->bnc", h1, params["wfc2"]) + params["bfc2"]
    return x1 + h2


# ----------------------------------- Main -------------------------------------

if __name__ == "__main__":
    B, N, C = 2, 8, 32
    num_heads = 4
    mlp_ratio = 4.0
    H = int(C * mlp_ratio)

    key = jax.random.PRNGKey(0)
    keys = jax.random.split(key, 8)

    params = {
        "ln1_w": jnp.ones((C,), jnp.float32),
        "ln1_b": jnp.zeros((C,), jnp.float32),
        "wqkv": 0.05 * jax.random.normal(keys[0], (3 * C, C), jnp.float32),
        "wproj": 0.05 * jax.random.normal(keys[1], (C, C), jnp.float32),
        "bproj": 0.05 * jax.random.normal(keys[2], (C,), jnp.float32),
        "ln2_w": jnp.ones((C,), jnp.float32),
        "ln2_b": jnp.zeros((C,), jnp.float32),
        "wfc1": 0.05 * jax.random.normal(keys[3], (H, C), jnp.float32),
        "bfc1": 0.05 * jax.random.normal(keys[4], (H,), jnp.float32),
        "wfc2": 0.05 * jax.random.normal(keys[5], (C, H), jnp.float32),
        "bfc2": 0.05 * jax.random.normal(keys[6], (C,), jnp.float32),
    }

    x = jax.random.normal(keys[7], (B, N, C), jnp.float32)

    prep = prepare_block_params(params, num_heads=num_heads)   # one-time param prep
    out = block_forward(x, prep, num_heads=num_heads)
    out = jax.block_until_ready(out)

    ref = block_reference(x, params, num_heads=num_heads)
    assert out.shape == (B, N, C)
    # bf16 MXU inputs (f32 accumulation) -> loosened tolerance vs the f32 reference.
    assert jnp.allclose(out, ref, atol=3e-2, rtol=3e-2), "mismatch vs JAX reference"

    print("KERNEL_OK")
</pallas_src>

<mosaic_0001>
module attributes {stable_mosaic.version = 11 : i64} {
  func.func @_block_kernel(%arg0: i32, %arg1: i32, %arg2: memref<1x8x32xf32, #tpu.memory_space<vmem>>, %arg3: memref<1x8x32xf32, #tpu.memory_space<vmem>>, %arg4: memref<1x32xf32, #tpu.memory_space<vmem>>, %arg5: memref<1x32xf32, #tpu.memory_space<vmem>>, %arg6: memref<32x32xbf16, #tpu.memory_space<vmem>>, %arg7: memref<64x32xbf16, #tpu.memory_space<vmem>>, %arg8: memref<32x32xbf16, #tpu.memory_space<vmem>>, %arg9: memref<1x32xf32, #tpu.memory_space<vmem>>, %arg10: memref<1x32xf32, #tpu.memory_space<vmem>>, %arg11: memref<1x32xf32, #tpu.memory_space<vmem>>, %arg12: memref<32x128xbf16, #tpu.memory_space<vmem>>, %arg13: memref<1x128xf32, #tpu.memory_space<vmem>>, %arg14: memref<128x32xbf16, #tpu.memory_space<vmem>>, %arg15: memref<1x32xf32, #tpu.memory_space<vmem>>, %arg16: memref<1x8x32xf32, #tpu.memory_space<vmem>>) attributes {dimension_semantics = [#tpu.dimension_semantics<parallel>, #tpu.dimension_semantics<parallel>], iteration_bounds = array<i64: 2, 1>, scalar_prefetch = 0 : i64, scratch_operands = 0 : i64, tpu.core_type = #tpu.core_type<tc>, window_params = [{transform_indices = @transform_0, window_bounds = array<i64: 1, 8, 32>}, {transform_indices = @transform_1, window_bounds = array<i64: 1, 8, 32>}, {pipeline_mode = #tpu.pipeline_mode<synchronous>, transform_indices = @transform_2, window_bounds = array<i64: 1, 32>}, {pipeline_mode = #tpu.pipeline_mode<synchronous>, transform_indices = @transform_3, window_bounds = array<i64: 1, 32>}, {pipeline_mode = #tpu.pipeline_mode<synchronous>, transform_indices = @transform_4, window_bounds = array<i64: 32, 32>}, {pipeline_mode = #tpu.pipeline_mode<synchronous>, transform_indices = @transform_5, window_bounds = array<i64: 64, 32>}, {pipeline_mode = #tpu.pipeline_mode<synchronous>, transform_indices = @transform_6, window_bounds = array<i64: 32, 32>}, {pipeline_mode = #tpu.pipeline_mode<synchronous>, transform_indices = @transform_7, window_bounds = array<i64: 1, 32>}, {pipeline_mode = #tpu.pipeline_mode<synchronous>, transform_indices = @transform_8, window_bounds = array<i64: 1, 32>}, {pipeline_mode = #tpu.pipeline_mode<synchronous>, transform_indices = @transform_9, window_bounds = array<i64: 1, 32>}, {pipeline_mode = #tpu.pipeline_mode<synchronous>, transform_indices = @transform_10, window_bounds = array<i64: 32, 128>}, {pipeline_mode = #tpu.pipeline_mode<synchronous>, transform_indices = @transform_11, window_bounds = array<i64: 1, 128>}, {pipeline_mode = #tpu.pipeline_mode<synchronous>, transform_indices = @transform_12, window_bounds = array<i64: 128, 32>}, {pipeline_mode = #tpu.pipeline_mode<synchronous>, transform_indices = @transform_13, window_bounds = array<i64: 1, 32>}, {transform_indices = @transform_14, window_bounds = array<i64: 1, 8, 32>}]} {
    %c0 = arith.constant 0 : index
    %c0_0 = arith.constant 0 : index
    %c0_1 = arith.constant 0 : index
    %0 = vector.load %arg2[%c0, %c0_0, %c0_1] : memref<1x8x32xf32, #tpu.memory_space<vmem>>, vector<1x8x32xf32>
    %1 = vector.shape_cast %0 : vector<1x8x32xf32> to vector<8x32xf32>
    %c0_2 = arith.constant 0 : index
    %c0_3 = arith.constant 0 : index
    %c0_4 = arith.constant 0 : index
    %2 = vector.load %arg3[%c0_2, %c0_3, %c0_4] : memref<1x8x32xf32, #tpu.memory_space<vmem>>, vector<1x8x32xf32>
    %3 = vector.shape_cast %2 : vector<1x8x32xf32> to vector<8x32xf32>
    %cst = arith.constant dense<0.000000e+00> : vector<8xf32>
    %4 = vector.multi_reduction <add>, %1, %cst [1] : vector<8x32xf32> to vector<8xf32>
    %5 = vector.shape_cast %4 : vector<8xf32> to vector<8x1xf32>
    %cst_5 = arith.constant 3.200000e+01 : f32
    %6 = vector.broadcast %cst_5 : f32 to vector<8x1xf32>
    %7 = arith.divf %5, %6 : vector<8x1xf32>
    %8 = vector.broadcast %7 : vector<8x1xf32> to vector<8x32xf32>
    %9 = arith.subf %1, %8 : vector<8x32xf32>
    %10 = arith.mulf %9, %9 : vector<8x32xf32>
    %cst_6 = arith.constant dense<0.000000e+00> : vector<8xf32>
    %11 = vector.multi_reduction <add>, %10, %cst_6 [1] : vector<8x32xf32> to vector<8xf32>
    %12 = vector.shape_cast %11 : vector<8xf32> to vector<8x1xf32>
    %cst_7 = arith.constant 3.200000e+01 : f32
    %13 = vector.broadcast %cst_7 : f32 to vector<8x1xf32>
    %14 = arith.divf %12, %13 : vector<8x1xf32>
    %15 = vector.broadcast %7 : vector<8x1xf32> to vector<8x32xf32>
    %16 = arith.subf %1, %15 : vector<8x32xf32>
    %cst_8 = arith.constant 9.99999974E-6 : f32
    %17 = vector.broadcast %cst_8 : f32 to vector<8x1xf32>
    %18 = arith.addf %14, %17 : vector<8x1xf32>
    %19 = math.rsqrt %18 : vector<8x1xf32>
    %20 = vector.broadcast %19 : vector<8x1xf32> to vector<8x32xf32>
    %21 = arith.mulf %16, %20 : vector<8x32xf32>
    %c0_9 = arith.constant 0 : index
    %c0_10 = arith.constant 0 : index
    %22 = vector.load %arg4[%c0_9, %c0_10] : memref<1x32xf32, #tpu.memory_space<vmem>>, vector<1x32xf32>
    %23 = vector.broadcast %22 : vector<1x32xf32> to vector<8x32xf32>
    %24 = arith.mulf %21, %23 : vector<8x32xf32>
    %c0_11 = arith.constant 0 : index
    %c0_12 = arith.constant 0 : index
    %25 = vector.load %arg5[%c0_11, %c0_12] : memref<1x32xf32, #tpu.memory_space<vmem>>, vector<1x32xf32>
    %26 = vector.broadcast %25 : vector<1x32xf32> to vector<8x32xf32>
    %27 = arith.addf %24, %26 : vector<8x32xf32>
    %cst_13 = arith.constant dense<0.000000e+00> : vector<8xf32>
    %28 = vector.multi_reduction <add>, %3, %cst_13 [1] : vector<8x32xf32> to vector<8xf32>
    %29 = vector.shape_cast %28 : vector<8xf32> to vector<8x1xf32>
    %cst_14 = arith.constant 3.200000e+01 : f32
    %30 = vector.broadcast %cst_14 : f32 to vector<8x1xf32>
    %31 = arith.divf %29, %30 : vector<8x1xf32>
    %32 = vector.broadcast %31 : vector<8x1xf32> to vector<8x32xf32>
    %33 = arith.subf %3, %32 : vector<8x32xf32>
    %34 = arith.mulf %33, %33 : vector<8x32xf32>
    %cst_15 = arith.constant dense<0.000000e+00> : vector<8xf32>
    %35 = vector.multi_reduction <add>, %34, %cst_15 [1] : vector<8x32xf32> to vector<8xf32>
    %36 = vector.shape_cast %35 : vector<8xf32> to vector<8x1xf32>
    %cst_16 = arith.constant 3.200000e+01 : f32
    %37 = vector.broadcast %cst_16 : f32 to vector<8x1xf32>
    %38 = arith.divf %36, %37 : vector<8x1xf32>
    %39 = vector.broadcast %31 : vector<8x1xf32> to vector<8x32xf32>
    %40 = arith.subf %3, %39 : vector<8x32xf32>
    %cst_17 = arith.constant 9.99999974E-6 : f32
    %41 = vector.broadcast %cst_17 : f32 to vector<8x1xf32>
    %42 = arith.addf %38, %41 : vector<8x1xf32>
    %43 = math.rsqrt %42 : vector<8x1xf32>
    %44 = vector.broadcast %43 : vector<8x1xf32> to vector<8x32xf32>
    %45 = arith.mulf %40, %44 : vector<8x32xf32>
    %c0_18 = arith.constant 0 : index
    %c0_19 = arith.constant 0 : index
    %46 = vector.load %arg4[%c0_18, %c0_19] : memref<1x32xf32, #tpu.memory_space<vmem>>, vector<1x32xf32>
    %47 = vector.broadcast %46 : vector<1x32xf32> to vector<8x32xf32>
    %48 = arith.mulf %45, %47 : vector<8x32xf32>
    %c0_20 = arith.constant 0 : index
    %c0_21 = arith.constant 0 : index
    %49 = vector.load %arg5[%c0_20, %c0_21] : memref<1x32xf32, #tpu.memory_space<vmem>>, vector<1x32xf32>
    %50 = vector.broadcast %49 : vector<1x32xf32> to vector<8x32xf32>
    %51 = arith.addf %48, %50 : vector<8x32xf32>
    %c0_22 = arith.constant 0 : index
    %c0_23 = arith.constant 0 : index
    %52 = vector.load %arg6[%c0_22, %c0_23] : memref<32x32xbf16, #tpu.memory_space<vmem>>, vector<32x32xbf16>
    %53 = arith.truncf %27 : vector<8x32xf32> to vector<8x32xbf16>
    "tpu.trace_start"() <{level = 10 : i32, message = "oc,qc->oq"}> : () -> ()
    %cst_24 = arith.constant dense<0.000000e+00> : vector<32x8xf32>
    %54 = tpu.matmul %52, %53, %cst_24 {dimension_numbers = #tpu.dot_dimension_numbers<[1], [1], [0], [0], [0, 0, 1, 0], [], []>} : vector<32x32xbf16>, vector<8x32xbf16>, vector<32x8xf32> -> vector<32x8xf32>
    "tpu.trace_stop"() : () -> ()
    %c0_25 = arith.constant 0 : index
    %c0_26 = arith.constant 0 : index
    %55 = vector.load %arg7[%c0_25, %c0_26] : memref<64x32xbf16, #tpu.memory_space<vmem>>, vector<64x32xbf16>
    %56 = arith.truncf %51 : vector<8x32xf32> to vector<8x32xbf16>
    "tpu.trace_start"() <{level = 10 : i32, message = "oc,nc->on"}> : () -> ()
    %cst_27 = arith.constant dense<0.000000e+00> : vector<64x8xf32>
    %57 = tpu.matmul %55, %56, %cst_27 {dimension_numbers = #tpu.dot_dimension_numbers<[1], [1], [0], [0], [0, 0, 1, 0], [], []>} : vector<64x32xbf16>, vector<8x32xbf16>, vector<64x8xf32> -> vector<64x8xf32>
    "tpu.trace_stop"() : () -> ()
    %58 = vector.extract_strided_slice %57 {offsets = [0, 0], sizes = [32, 8], strides = [1, 1]} : vector<64x8xf32> to vector<32x8xf32>
    %59 = vector.extract_strided_slice %57 {offsets = [32, 0], sizes = [32, 8], strides = [1, 1]} : vector<64x8xf32> to vector<32x8xf32>
    %60 = vector.shape_cast %54 : vector<32x8xf32> to vector<4x8x8xf32>
    %61 = vector.shape_cast %58 : vector<32x8xf32> to vector<4x8x8xf32>
    %62 = vector.shape_cast %59 : vector<32x8xf32> to vector<4x8x8xf32>
    %63 = arith.truncf %60 : vector<4x8x8xf32> to vector<4x8x8xbf16>
    %64 = arith.truncf %61 : vector<4x8x8xf32> to vector<4x8x8xbf16>
    "tpu.trace_start"() <{level = 10 : i32, message = "hdq,hdk->hqk"}> : () -> ()
    %cst_28 = arith.constant dense<0.000000e+00> : vector<4x8x8xf32>
    %65 = tpu.matmul %63, %64, %cst_28 {dimension_numbers = #tpu.dot_dimension_numbers<[1], [1], [2], [2], [0, 0, 0, 2, 1, 2], [0], [0]>} : vector<4x8x8xbf16>, vector<4x8x8xbf16>, vector<4x8x8xf32> -> vector<4x8x8xf32>
    "tpu.trace_stop"() : () -> ()
    %cst_29 = arith.constant dense<0xFF800000> : vector<4x8xf32>
    %66 = vector.multi_reduction <maximumf>, %65, %cst_29 [2] : vector<4x8x8xf32> to vector<4x8xf32>
    %67 = vector.shape_cast %66 : vector<4x8xf32> to vector<4x8x1xf32>
    %68 = vector.broadcast %67 : vector<4x8x1xf32> to vector<4x8x8xf32>
    %69 = arith.subf %65, %68 : vector<4x8x8xf32>
    %70 = math.exp %69 : vector<4x8x8xf32>
    %cst_30 = arith.constant dense<0.000000e+00> : vector<4x8xf32>
    %71 = vector.multi_reduction <add>, %70, %cst_30 [2] : vector<4x8x8xf32> to vector<4x8xf32>
    %72 = vector.shape_cast %71 : vector<4x8xf32> to vector<4x8x1xf32>
    %73 = tpu.reciprocal %72 {approx = true} : vector<4x8x1xf32> -> vector<4x8x1xf32>
    %74 = vector.broadcast %73 : vector<4x8x1xf32> to vector<4x8x8xf32>
    %75 = arith.mulf %70, %74 : vector<4x8x8xf32>
    %76 = arith.truncf %62 : vector<4x8x8xf32> to vector<4x8x8xbf16>
    %77 = arith.truncf %75 : vector<4x8x8xf32> to vector<4x8x8xbf16>
    "tpu.trace_start"() <{level = 10 : i32, message = "hdk,hqk->hdq"}> : () -> ()
    %cst_31 = arith.constant dense<0.000000e+00> : vector<4x8x8xf32>
    %78 = tpu.matmul %76, %77, %cst_31 {dimension_numbers = #tpu.dot_dimension_numbers<[2], [2], [1], [1], [0, 0, 0, 1, 1, 1], [0], [0]>} : vector<4x8x8xbf16>, vector<4x8x8xbf16>, vector<4x8x8xf32> -> vector<4x8x8xf32>
    "tpu.trace_stop"() : () -> ()
    %79 = vector.shape_cast %78 : vector<4x8x8xf32> to vector<32x8xf32>
    %80 = arith.truncf %79 : vector<32x8xf32> to vector<32x8xbf16>
    %c0_32 = arith.constant 0 : index
    %c0_33 = arith.constant 0 : index
    %81 = vector.load %arg8[%c0_32, %c0_33] : memref<32x32xbf16, #tpu.memory_space<vmem>>, vector<32x32xbf16>
    "tpu.trace_start"() <{level = 10 : i32, message = "cq,co->qo"}> : () -> ()
    %cst_34 = arith.constant dense<0.000000e+00> : vector<8x32xf32>
    %82 = tpu.matmul %80, %81, %cst_34 {dimension_numbers = #tpu.dot_dimension_numbers<[0], [0], [1], [1], [0, 1, 1, 1], [], []>} : vector<32x8xbf16>, vector<32x32xbf16>, vector<8x32xf32> -> vector<8x32xf32>
    "tpu.trace_stop"() : () -> ()
    %c0_35 = arith.constant 0 : index
    %c0_36 = arith.constant 0 : index
    %83 = vector.load %arg9[%c0_35, %c0_36] : memref<1x32xf32, #tpu.memory_space<vmem>>, vector<1x32xf32>
    %84 = vector.broadcast %83 : vector<1x32xf32> to vector<8x32xf32>
    %85 = arith.addf %82, %84 : vector<8x32xf32>
    %86 = arith.addf %1, %85 : vector<8x32xf32>
    %cst_37 = arith.constant dense<0.000000e+00> : vector<8xf32>
    %87 = vector.multi_reduction <add>, %86, %cst_37 [1] : vector<8x32xf32> to vector<8xf32>
    %88 = vector.shape_cast %87 : vector<8xf32> to vector<8x1xf32>
    %cst_38 = arith.constant 3.200000e+01 : f32
    %89 = vector.broadcast %cst_38 : f32 to vector<8x1xf32>
    %90 = arith.divf %88, %89 : vector<8x1xf32>
    %91 = vector.broadcast %90 : vector<8x1xf32> to vector<8x32xf32>
    %92 = arith.subf %86, %91 : vector<8x32xf32>
    %93 = arith.mulf %92, %92 : vector<8x32xf32>
    %cst_39 = arith.constant dense<0.000000e+00> : vector<8xf32>
    %94 = vector.multi_reduction <add>, %93, %cst_39 [1] : vector<8x32xf32> to vector<8xf32>
    %95 = vector.shape_cast %94 : vector<8xf32> to vector<8x1xf32>
    %cst_40 = arith.constant 3.200000e+01 : f32
    %96 = vector.broadcast %cst_40 : f32 to vector<8x1xf32>
    %97 = arith.divf %95, %96 : vector<8x1xf32>
    %98 = vector.broadcast %90 : vector<8x1xf32> to vector<8x32xf32>
    %99 = arith.subf %86, %98 : vector<8x32xf32>
    %cst_41 = arith.constant 9.99999974E-6 : f32
    %100 = vector.broadcast %cst_41 : f32 to vector<8x1xf32>
    %101 = arith.addf %97, %100 : vector<8x1xf32>
    %102 = math.rsqrt %101 : vector<8x1xf32>
    %103 = vector.broadcast %102 : vector<8x1xf32> to vector<8x32xf32>
    %104 = arith.mulf %99, %103 : vector<8x32xf32>
    %c0_42 = arith.constant 0 : index
    %c0_43 = arith.constant 0 : index
    %105 = vector.load %arg10[%c0_42, %c0_43] : memref<1x32xf32, #tpu.memory_space<vmem>>, vector<1x32xf32>
    %106 = vector.broadcast %105 : vector<1x32xf32> to vector<8x32xf32>
    %107 = arith.mulf %104, %106 : vector<8x32xf32>
    %c0_44 = arith.constant 0 : index
    %c0_45 = arith.constant 0 : index
    %108 = vector.load %arg11[%c0_44, %c0_45] : memref<1x32xf32, #tpu.memory_space<vmem>>, vector<1x32xf32>
    %109 = vector.broadcast %108 : vector<1x32xf32> to vector<8x32xf32>
    %110 = arith.addf %107, %109 : vector<8x32xf32>
    %111 = arith.truncf %110 : vector<8x32xf32> to vector<8x32xbf16>
    %c0_46 = arith.constant 0 : index
    %c0_47 = arith.constant 0 : index
    %112 = vector.load %arg12[%c0_46, %c0_47] : memref<32x128xbf16, #tpu.memory_space<vmem>>, vector<32x128xbf16>
    %cst_48 = arith.constant dense<0.000000e+00> : vector<8x128xf32>
    %113 = tpu.matmul %111, %112, %cst_48 {dimension_numbers = #tpu.dot_dimension_numbers<[1], [0], [0], [1], [0, 0, 1, 1], [], []>} : vector<8x32xbf16>, vector<32x128xbf16>, vector<8x128xf32> -> vector<8x128xf32>
    %c0_49 = arith.constant 0 : index
    %c0_50 = arith.constant 0 : index
    %114 = vector.load %arg13[%c0_49, %c0_50] : memref<1x128xf32, #tpu.memory_space<vmem>>, vector<1x128xf32>
    %115 = vector.broadcast %114 : vector<1x128xf32> to vector<8x128xf32>
    %116 = arith.addf %113, %115 : vector<8x128xf32>
    %cst_51 = arith.constant 5.000000e-01 : f32
    %117 = vector.broadcast %cst_51 : f32 to vector<8x128xf32>
    %118 = arith.mulf %117, %116 : vector<8x128xf32>
    %cst_52 = arith.constant 0.707106769 : f32
    %119 = vector.broadcast %cst_52 : f32 to vector<8x128xf32>
    %120 = arith.mulf %116, %119 : vector<8x128xf32>
    %121 = math.erf %120 : vector<8x128xf32>
    %cst_53 = arith.constant 1.000000e+00 : f32
    %122 = vector.broadcast %cst_53 : f32 to vector<8x128xf32>
    %123 = arith.addf %122, %121 : vector<8x128xf32>
    %124 = arith.mulf %118, %123 : vector<8x128xf32>
    %125 = arith.truncf %124 : vector<8x128xf32> to vector<8x128xbf16>
    %c0_54 = arith.constant 0 : index
    %c0_55 = arith.constant 0 : index
    %126 = vector.load %arg14[%c0_54, %c0_55] : memref<128x32xbf16, #tpu.memory_space<vmem>>, vector<128x32xbf16>
    %cst_56 = arith.constant dense<0.000000e+00> : vector<8x32xf32>
    %127 = tpu.matmul %125, %126, %cst_56 {dimension_numbers = #tpu.dot_dimension_numbers<[1], [0], [0], [1], [0, 0, 1, 1], [], []>} : vector<8x128xbf16>, vector<128x32xbf16>, vector<8x32xf32> -> vector<8x32xf32>
    %c0_57 = arith.constant 0 : index
    %c0_58 = arith.constant 0 : index
    %128 = vector.load %arg15[%c0_57, %c0_58] : memref<1x32xf32, #tpu.memory_space<vmem>>, vector<1x32xf32>
    %129 = vector.broadcast %128 : vector<1x32xf32> to vector<8x32xf32>
    %130 = arith.addf %127, %129 : vector<8x32xf32>
    %131 = arith.addf %86, %130 : vector<8x32xf32>
    %c0_59 = arith.constant 0 : index
    %c0_60 = arith.constant 0 : index
    %c0_61 = arith.constant 0 : index
    %132 = vector.load %arg16[%c0_59, %c0_60, %c0_61] : memref<1x8x32xf32, #tpu.memory_space<vmem>>, vector<1x8x32xf32>
    %133 = vector.shape_cast %132 : vector<1x8x32xf32> to vector<8x32xf32>
    %134 = vector.shape_cast %131 : vector<8x32xf32> to vector<1x8x32xf32>
    tpu.vector_store %arg16[%c0_59, %c0_60, %c0_61], %134 {strides = array<i32>} : memref<1x8x32xf32, #tpu.memory_space<vmem>>, vector<1x8x32xf32>,
    return
  }
  func.func @transform_0(%arg0: i32, %arg1: i32) -> (i32, i32, i32) {
    %c0_i32 = arith.constant 0 : i32
    %c0_i32_0 = arith.constant 0 : i32
    return %arg0, %arg1, %c0_i32 : i32, i32, i32
  }
  func.func @transform_1(%arg0: i32, %arg1: i32) -> (i32, i32, i32) {
    %c0_i32 = arith.constant 0 : i32
    %c0_i32_0 = arith.constant 0 : i32
    %c0_i32_1 = arith.constant 0 : i32
    return %arg0, %c0_i32, %c0_i32_0 : i32, i32, i32
  }
  func.func @transform_2(%arg0: i32, %arg1: i32) -> (i32, i32) {
    %c0_i32 = arith.constant 0 : i32
    %c0_i32_0 = arith.constant 0 : i32
    %c0_i32_1 = arith.constant 0 : i32
    return %c0_i32, %c0_i32_0 : i32, i32
  }
  func.func @transform_3(%arg0: i32, %arg1: i32) -> (i32, i32) {
    %c0_i32 = arith.constant 0 : i32
    %c0_i32_0 = arith.constant 0 : i32
    %c0_i32_1 = arith.constant 0 : i32
    return %c0_i32, %c0_i32_0 : i32, i32
  }
  func.func @transform_4(%arg0: i32, %arg1: i32) -> (i32, i32) {
    %c0_i32 = arith.constant 0 : i32
    %c0_i32_0 = arith.constant 0 : i32
    %c0_i32_1 = arith.constant 0 : i32
    return %c0_i32, %c0_i32_0 : i32, i32
  }
  func.func @transform_5(%arg0: i32, %arg1: i32) -> (i32, i32) {
    %c0_i32 = arith.constant 0 : i32
    %c0_i32_0 = arith.constant 0 : i32
    %c0_i32_1 = arith.constant 0 : i32
    return %c0_i32, %c0_i32_0 : i32, i32
  }
  func.func @transform_6(%arg0: i32, %arg1: i32) -> (i32, i32) {
    %c0_i32 = arith.constant 0 : i32
    %c0_i32_0 = arith.constant 0 : i32
    %c0_i32_1 = arith.constant 0 : i32
    return %c0_i32, %c0_i32_0 : i32, i32
  }
  func.func @transform_7(%arg0: i32, %arg1: i32) -> (i32, i32) {
    %c0_i32 = arith.constant 0 : i32
    %c0_i32_0 = arith.constant 0 : i32
    %c0_i32_1 = arith.constant 0 : i32
    return %c0_i32, %c0_i32_0 : i32, i32
  }
  func.func @transform_8(%arg0: i32, %arg1: i32) -> (i32, i32) {
    %c0_i32 = arith.constant 0 : i32
    %c0_i32_0 = arith.constant 0 : i32
    %c0_i32_1 = arith.constant 0 : i32
    return %c0_i32, %c0_i32_0 : i32, i32
  }
  func.func @transform_9(%arg0: i32, %arg1: i32) -> (i32, i32) {
    %c0_i32 = arith.constant 0 : i32
    %c0_i32_0 = arith.constant 0 : i32
    %c0_i32_1 = arith.constant 0 : i32
    return %c0_i32, %c0_i32_0 : i32, i32
  }
  func.func @transform_10(%arg0: i32, %arg1: i32) -> (i32, i32) {
    %c0_i32 = arith.constant 0 : i32
    %c0_i32_0 = arith.constant 0 : i32
    %c0_i32_1 = arith.constant 0 : i32
    return %c0_i32, %c0_i32_0 : i32, i32
  }
  func.func @transform_11(%arg0: i32, %arg1: i32) -> (i32, i32) {
    %c0_i32 = arith.constant 0 : i32
    %c0_i32_0 = arith.constant 0 : i32
    %c0_i32_1 = arith.constant 0 : i32
    return %c0_i32, %c0_i32_0 : i32, i32
  }
  func.func @transform_12(%arg0: i32, %arg1: i32) -> (i32, i32) {
    %c0_i32 = arith.constant 0 : i32
    %c0_i32_0 = arith.constant 0 : i32
    %c0_i32_1 = arith.constant 0 : i32
    return %c0_i32, %c0_i32_0 : i32, i32
  }
  func.func @transform_13(%arg0: i32, %arg1: i32) -> (i32, i32) {
    %c0_i32 = arith.constant 0 : i32
    %c0_i32_0 = arith.constant 0 : i32
    %c0_i32_1 = arith.constant 0 : i32
    return %c0_i32, %c0_i32_0 : i32, i32
  }
  func.func @transform_14(%arg0: i32, %arg1: i32) -> (i32, i32, i32) {
    %c0_i32 = arith.constant 0 : i32
    %c0_i32_0 = arith.constant 0 : i32
    return %arg0, %arg1, %c0_i32 : i32, i32, i32
  }
}

</mosaic_0001>

<llo_original>
// kernel: tpu_custom_call.1
$region0: #{tpu_custom_call.1}
  #allocation0 [shape = 'u32[]', space=smem, size = 0x4, offset = 0x4, fixed_abs, tag = 'smem constant byte address 0x4 - core index']
  #allocation1 [shape = 'u32[144,128]{1,0:T(1,128)}', space=vmem, size = 0x12000, scoped, tag = 'internal scratch']
  %s0 = inlined_call_operand.vmem [shape: f32[2,8,32], index: 0, kind: input, shape index: {}]
  %s1 = inlined_call_operand.vmem [shape: f32[2,8,32], index: 1, kind: input, shape index: {}]
  %s2 = inlined_call_operand.vmem [shape: f32[1,32], index: 2, kind: input, shape index: {}]
  %s3 = inlined_call_operand.vmem [shape: f32[1,32], index: 3, kind: input, shape index: {}]
  %s4 = inlined_call_operand.vmem [shape: bf16[32,32], index: 4, kind: input, shape index: {}]
  %s5 = inlined_call_operand.vmem [shape: bf16[64,32], index: 5, kind: input, shape index: {}]
  %s6 = inlined_call_operand.vmem [shape: bf16[32,32], index: 6, kind: input, shape index: {}]
  %s7 = inlined_call_operand.vmem [shape: f32[1,32], index: 7, kind: input, shape index: {}]
  %s8 = inlined_call_operand.vmem [shape: f32[1,32], index: 8, kind: input, shape index: {}]
  %s9 = inlined_call_operand.vmem [shape: f32[1,32], index: 9, kind: input, shape index: {}]
  %s10 = inlined_call_operand.vmem [shape: bf16[32,128], index: 10, kind: input, shape index: {}]
  %s11 = inlined_call_operand.vmem [shape: f32[1,128], index: 11, kind: input, shape index: {}]
  %s12 = inlined_call_operand.vmem [shape: bf16[128,32], index: 12, kind: input, shape index: {}]
  %s13 = inlined_call_operand.vmem [shape: f32[1,32], index: 13, kind: input, shape index: {}]
  %s14 = inlined_call_operand.hbm [shape: f32[2,8,32], index: 14, kind: output, shape index: {}]
  %s15 = sld [smem:[#allocation0]]
  $region89: #{tpu_custom_call.1} parent=0
    _
  %s17 = ssub.s32 1, %s15
  %s18 = scalar_select 0, %s17, %s15
  $region1: #{tpu_custom_call.1} parent=0
    #allocation2 [shape = 'u8[8192]{0}', space=vmem, size = 0x2000, scoped, tag = 'output window, operand 0']
    #allocation3 [shape = 's32[2]{0}', space=sflag, size = 0x8, scoped, tag = 'scoped memory for tpu_custom_call.1']
    %19 = vsyncpa [#allocation3], 0
    %s20 = scalar_lea.sflag [#allocation3], 1
    %21 = vsyncpa %s20, 0
    loop: start=0, step=1, limit=4
    $region2: #{tpu_custom_call.1} parent=1 // loop_pre_header
      _
    $region3: #{tpu_custom_call.1} parent=1 // loop_header
      %s23 = sphi 0, %s27
      %p24 = scmp.ge.s32.totalorder %s23, 4
      %s30 = sphi 0, %s42
      %s31 = sphi 0, %s38
      %s32 = sphi 0, %s30
      %s33 = sphi 0, %s31
      %s34 = sphi 0, %s32
      %s35 = sphi 0, %s33
      %s47 = sphi 0, %s49
      %s50 = sphi 0, %s47
      %s51 = sphi 0, %s50
      %s67 = sphi 0, %s51
      %s73 = sphi 0, %s75
      %s76 = sphi 0, %s73
      %s77 = sphi 0, %s76
      %s93 = sphi 0, %s77
      %s97 = sphi 0, %s97
      %s99 = sphi 0, %s97
      %s100 = sphi 0, %s99
      %s114 = sphi 0, %s100
      %s118 = sphi 0, %s118
      %s120 = sphi 0, %s118
      %s121 = sphi 0, %s120
      %s135 = sphi 0, %s121
      %s139 = sphi 0, %s139
      %s141 = sphi 0, %s139
      %s142 = sphi 0, %s141
      %s156 = sphi 0, %s142
      %s160 = sphi 0, %s160
      %s162 = sphi 0, %s160
      %s163 = sphi 0, %s162
      %s177 = sphi 0, %s163
      %s181 = sphi 0, %s181
      %s183 = sphi 0, %s181
      %s184 = sphi 0, %s183
      %s198 = sphi 0, %s184
      %s202 = sphi 0, %s202
      %s204 = sphi 0, %s202
      %s205 = sphi 0, %s204
      %s219 = sphi 0, %s205
      %s223 = sphi 0, %s223
      %s225 = sphi 0, %s223
      %s226 = sphi 0, %s225
      %s240 = sphi 0, %s226
      %s244 = sphi 0, %s244
      %s246 = sphi 0, %s244
      %s247 = sphi 0, %s246
      %s261 = sphi 0, %s247
      %s265 = sphi 0, %s265
      %s267 = sphi 0, %s265
      %s268 = sphi 0, %s267
      %s282 = sphi 0, %s268
      %s286 = sphi 0, %s286
      %s288 = sphi 0, %s286
      %s289 = sphi 0, %s288
      %s303 = sphi 0, %s289
      %s307 = sphi 0, %s307
      %s309 = sphi 0, %s307
      %s310 = sphi 0, %s309
      %s324 = sphi 0, %s310
      %s328 = sphi 0, %s328
      %s330 = sphi 0, %s328
      %s331 = sphi 0, %s330
      %s345 = sphi 0, %s331
      %s353 = sphi 0, %s355
      %s356 = sphi 0, %s353
      %s357 = sphi 0, %s356
      %s373 = sphi 0, %s357
    $region4: #{tpu_custom_call.1} parent=1 // loop_header_branch
      %26 = sbr.rel (%p24) target = $region8
    $region5: #{tpu_custom_call.1} parent=1 // loop_body
      %s28 = ssub.s32 %s23, 1
      %s29 = ssub.s32 %s23, 2
      %s36 = sadd.s32 1, %s31
      %p37 = scmp.ge.s32.totalorder %s36, 1
      %s38 = scalar_select %p37, 0, %s36
      %s39 = sadd.s32 1, %s30
      %s40 = scalar_select %p37, %s39, %s30
      %p41 = scmp.ge.s32.totalorder %s40, 2
      %s42 = scalar_select %p41, 0, %s40
      %s43 = ssub.s32 %s30, %s42
      %s44 = ssub.s32 %s31, %s38
      %s45 = sor.u32 %s43, %s44
      %p46 = scmp.eq.s32.totalorder %s45, 0
      %s48 = sadd.s32 %s47, 1
      %s49 = scalar_select %p46, %s47, %s48
      %p52 = pneg %p46
      %p53 = scmp.eq.s32.totalorder %s23, 1
      %p54 = por %p52, %p53
      %p55 = scmp.ne.s32.totalorder %s47, %s50
      %p56 = scmp.eq.s32.totalorder %s23, 0
      %p57 = por %p55, %p56
      %p58 = scmp.ne.s32.totalorder %s47, %s50
      %p59 = scmp.eq.s32.totalorder %s28, 1
      %p60 = por %p58, %p59
      %p61 = scmp.ne.s32.totalorder %s50, %s51
      %p62 = scmp.eq.s32.totalorder %s28, 0
      %p63 = por %p61, %p62
      %p64 = scmp.ne.s32.totalorder %s50, %s51
      %p65 = scmp.eq.s32.totalorder %s29, 1
      %p66 = por %p64, %p65
      %p68 = scmp.ne.s32.totalorder %s51, %s67
      %p69 = scmp.eq.s32.totalorder %s29, 0
      %p70 = por %p68, %p69
      %s71 = ssub.s32 %s30, %s42
      %p72 = scmp.eq.s32.totalorder %s71, 0
      %s74 = sadd.s32 %s73, 1
      %s75 = scalar_select %p72, %s73, %s74
      %p78 = pneg %p72
      %p79 = scmp.eq.s32.totalorder %s23, 1
      %p80 = por %p78, %p79
      %p81 = scmp.ne.s32.totalorder %s73, %s76
      %p82 = scmp.eq.s32.totalorder %s23, 0
      %p83 = por %p81, %p82
      %p84 = scmp.ne.s32.totalorder %s73, %s76
      %p85 = scmp.eq.s32.totalorder %s28, 1
      %p86 = por %p84, %p85
      %p87 = scmp.ne.s32.totalorder %s76, %s77
      %p88 = scmp.eq.s32.totalorder %s28, 0
      %p89 = por %p87, %p88
      %p90 = scmp.ne.s32.totalorder %s76, %s77
      %p91 = scmp.eq.s32.totalorder %s29, 1
      %p92 = por %p90, %p91
      %p94 = scmp.ne.s32.totalorder %s77, %s93
      %p95 = scmp.eq.s32.totalorder %s29, 0
      %p96 = por %p94, %p95
      %s98 = sadd.s32 %s97, 1
      %p101 = scmp.eq.s32.totalorder %s23, 1
      %p102 = scmp.ne.s32.totalorder %s97, %s99
      %p103 = scmp.eq.s32.totalorder %s23, 0
      %p104 = por %p102, %p103
      %p105 = scmp.ne.s32.totalorder %s97, %s99
      %p106 = scmp.eq.s32.totalorder %s28, 1
      %p107 = por %p105, %p106
      %p108 = scmp.ne.s32.totalorder %s99, %s100
      %p109 = scmp.eq.s32.totalorder %s28, 0
      %p110 = por %p108, %p109
      %p111 = scmp.ne.s32.totalorder %s99, %s100
      %p112 = scmp.eq.s32.totalorder %s29, 1
      %p113 = por %p111, %p112
      %p115 = scmp.ne.s32.totalorder %s100, %s114
      %p116 = scmp.eq.s32.totalorder %s29, 0
      %p117 = por %p115, %p116
      %s119 = sadd.s32 %s118, 1
      %p122 = scmp.eq.s32.totalorder %s23, 1
      %p123 = scmp.ne.s32.totalorder %s118, %s120
      %p124 = scmp.eq.s32.totalorder %s23, 0
      %p125 = por %p123, %p124
      %p126 = scmp.ne.s32.totalorder %s118, %s120
      %p127 = scmp.eq.s32.totalorder %s28, 1
      %p128 = por %p126, %p127
      %p129 = scmp.ne.s32.totalorder %s120, %s121
      %p130 = scmp.eq.s32.totalorder %s28, 0
      %p131 = por %p129, %p130
      %p132 = scmp.ne.s32.totalorder %s120, %s121
      %p133 = scmp.eq.s32.totalorder %s29, 1
      %p134 = por %p132, %p133
      %p136 = scmp.ne.s32.totalorder %s121, %s135
      %p137 = scmp.eq.s32.totalorder %s29, 0
      %p138 = por %p136, %p137
      %s140 = sadd.s32 %s139, 1
      %p143 = scmp.eq.s32.totalorder %s23, 1
      %p144 = scmp.ne.s32.totalorder %s139, %s141
      %p145 = scmp.eq.s32.totalorder %s23, 0
      %p146 = por %p144, %p145
      %p147 = scmp.ne.s32.totalorder %s139, %s141
      %p148 = scmp.eq.s32.totalorder %s28, 1
      %p149 = por %p147, %p148
      %p150 = scmp.ne.s32.totalorder %s141, %s142
      %p151 = scmp.eq.s32.totalorder %s28, 0
      %p152 = por %p150, %p151
      %p153 = scmp.ne.s32.totalorder %s141, %s142
      %p154 = scmp.eq.s32.totalorder %s29, 1
      %p155 = por %p153, %p154
      %p157 = scmp.ne.s32.totalorder %s142, %s156
      %p158 = scmp.eq.s32.totalorder %s29, 0
      %p159 = por %p157, %p158
      %s161 = sadd.s32 %s160, 1
      %p164 = scmp.eq.s32.totalorder %s23, 1
      %p165 = scmp.ne.s32.totalorder %s160, %s162
      %p166 = scmp.eq.s32.totalorder %s23, 0
      %p167 = por %p165, %p166
      %p168 = scmp.ne.s32.totalorder %s160, %s162
      %p169 = scmp.eq.s32.totalorder %s28, 1
      %p170 = por %p168, %p169
      %p171 = scmp.ne.s32.totalorder %s162, %s163
      %p172 = scmp.eq.s32.totalorder %s28, 0
      %p173 = por %p171, %p172
      %p174 = scmp.ne.s32.totalorder %s162, %s163
      %p175 = scmp.eq.s32.totalorder %s29, 1
      %p176 = por %p174, %p175
      %p178 = scmp.ne.s32.totalorder %s163, %s177
      %p179 = scmp.eq.s32.totalorder %s29, 0
      %p180 = por %p178, %p179
      %s182 = sadd.s32 %s181, 1
      %p185 = scmp.eq.s32.totalorder %s23, 1
      %p186 = scmp.ne.s32.totalorder %s181, %s183
      %p187 = scmp.eq.s32.totalorder %s23, 0
      %p188 = por %p186, %p187
      %p189 = scmp.ne.s32.totalorder %s181, %s183
      %p190 = scmp.eq.s32.totalorder %s28, 1
      %p191 = por %p189, %p190
      %p192 = scmp.ne.s32.totalorder %s183, %s184
      %p193 = scmp.eq.s32.totalorder %s28, 0
      %p194 = por %p192, %p193
      %p195 = scmp.ne.s32.totalorder %s183, %s184
      %p196 = scmp.eq.s32.totalorder %s29, 1
      %p197 = por %p195, %p196
      %p199 = scmp.ne.s32.totalorder %s184, %s198
      %p200 = scmp.eq.s32.totalorder %s29, 0
      %p201 = por %p199, %p200
      %s203 = sadd.s32 %s202, 1
      %p206 = scmp.eq.s32.totalorder %s23, 1
      %p207 = scmp.ne.s32.totalorder %s202, %s204
      %p208 = scmp.eq.s32.totalorder %s23, 0
      %p209 = por %p207, %p208
      %p210 = scmp.ne.s32.totalorder %s202, %s204
      %p211 = scmp.eq.s32.totalorder %s28, 1
      %p212 = por %p210, %p211
      %p213 = scmp.ne.s32.totalorder %s204, %s205
      %p214 = scmp.eq.s32.totalorder %s28, 0
      %p215 = por %p213, %p214
      %p216 = scmp.ne.s32.totalorder %s204, %s205
      %p217 = scmp.eq.s32.totalorder %s29, 1
      %p218 = por %p216, %p217
      %p220 = scmp.ne.s32.totalorder %s205, %s219
      %p221 = scmp.eq.s32.totalorder %s29, 0
      %p222 = por %p220, %p221
      %s224 = sadd.s32 %s223, 1
      %p227 = scmp.eq.s32.totalorder %s23, 1
      %p228 = scmp.ne.s32.totalorder %s223, %s225
      %p229 = scmp.eq.s32.totalorder %s23, 0
      %p230 = por %p228, %p229
      %p231 = scmp.ne.s32.totalorder %s223, %s225
      %p232 = scmp.eq.s32.totalorder %s28, 1
      %p233 = por %p231, %p232
      %p234 = scmp.ne.s32.totalorder %s225, %s226
      %p235 = scmp.eq.s32.totalorder %s28, 0
      %p236 = por %p234, %p235
      %p237 = scmp.ne.s32.totalorder %s225, %s226
      %p238 = scmp.eq.s32.totalorder %s29, 1
      %p239 = por %p237, %p238
      %p241 = scmp.ne.s32.totalorder %s226, %s240
      %p242 = scmp.eq.s32.totalorder %s29, 0
      %p243 = por %p241, %p242
      %s245 = sadd.s32 %s244, 1
      %p248 = scmp.eq.s32.totalorder %s23, 1
      %p249 = scmp.ne.s32.totalorder %s244, %s246
      %p250 = scmp.eq.s32.totalorder %s23, 0
      %p251 = por %p249, %p250
      %p252 = scmp.ne.s32.totalorder %s244, %s246
      %p253 = scmp.eq.s32.totalorder %s28, 1
      %p254 = por %p252, %p253
      %p255 = scmp.ne.s32.totalorder %s246, %s247
      %p256 = scmp.eq.s32.totalorder %s28, 0
      %p257 = por %p255, %p256
      %p258 = scmp.ne.s32.totalorder %s246, %s247
      %p259 = scmp.eq.s32.totalorder %s29, 1
      %p260 = por %p258, %p259
      %p262 = scmp.ne.s32.totalorder %s247, %s261
      %p263 = scmp.eq.s32.totalorder %s29, 0
      %p264 = por %p262, %p263
      %s266 = sadd.s32 %s265, 1
      %p269 = scmp.eq.s32.totalorder %s23, 1
      %p270 = scmp.ne.s32.totalorder %s265, %s267
      %p271 = scmp.eq.s32.totalorder %s23, 0
      %p272 = por %p270, %p271
      %p273 = scmp.ne.s32.totalorder %s265, %s267
      %p274 = scmp.eq.s32.totalorder %s28, 1
      %p275 = por %p273, %p274
      %p276 = scmp.ne.s32.totalorder %s267, %s268
      %p277 = scmp.eq.s32.totalorder %s28, 0
      %p278 = por %p276, %p277
      %p279 = scmp.ne.s32.totalorder %s267, %s268
      %p280 = scmp.eq.s32.totalorder %s29, 1
      %p281 = por %p279, %p280
      %p283 = scmp.ne.s32.totalorder %s268, %s282
      %p284 = scmp.eq.s32.totalorder %s29, 0
      %p285 = por %p283, %p284
      %s287 = sadd.s32 %s286, 1
      %p290 = scmp.eq.s32.totalorder %s23, 1
      %p291 = scmp.ne.s32.totalorder %s286, %s288
      %p292 = scmp.eq.s32.totalorder %s23, 0
      %p293 = por %p291, %p292
      %p294 = scmp.ne.s32.totalorder %s286, %s288
      %p295 = scmp.eq.s32.totalorder %s28, 1
      %p296 = por %p294, %p295
      %p297 = scmp.ne.s32.totalorder %s288, %s289
      %p298 = scmp.eq.s32.totalorder %s28, 0
      %p299 = por %p297, %p298
      %p300 = scmp.ne.s32.totalorder %s288, %s289
      %p301 = scmp.eq.s32.totalorder %s29, 1
      %p302 = por %p300, %p301
      %p304 = scmp.ne.s32.totalorder %s289, %s303
      %p305 = scmp.eq.s32.totalorder %s29, 0
      %p306 = por %p304, %p305
      %s308 = sadd.s32 %s307, 1
      %p311 = scmp.eq.s32.totalorder %s23, 1
      %p312 = scmp.ne.s32.totalorder %s307, %s309
      %p313 = scmp.eq.s32.totalorder %s23, 0
      %p314 = por %p312, %p313
      %p315 = scmp.ne.s32.totalorder %s307, %s309
      %p316 = scmp.eq.s32.totalorder %s28, 1
      %p317 = por %p315, %p316
      %p318 = scmp.ne.s32.totalorder %s309, %s310
      %p319 = scmp.eq.s32.totalorder %s28, 0
      %p320 = por %p318, %p319
      %p321 = scmp.ne.s32.totalorder %s309, %s310
      %p322 = scmp.eq.s32.totalorder %s29, 1
      %p323 = por %p321, %p322
      %p325 = scmp.ne.s32.totalorder %s310, %s324
      %p326 = scmp.eq.s32.totalorder %s29, 0
      %p327 = por %p325, %p326
      %s329 = sadd.s32 %s328, 1
      %p332 = scmp.eq.s32.totalorder %s23, 1
      %p333 = scmp.ne.s32.totalorder %s328, %s330
      %p334 = scmp.eq.s32.totalorder %s23, 0
      %p335 = por %p333, %p334
      %p336 = scmp.ne.s32.totalorder %s328, %s330
      %p337 = scmp.eq.s32.totalorder %s28, 1
      %p338 = por %p336, %p337
      %p339 = scmp.ne.s32.totalorder %s330, %s331
      %p340 = scmp.eq.s32.totalorder %s28, 0
      %p341 = por %p339, %p340
      %p342 = scmp.ne.s32.totalorder %s330, %s331
      %p343 = scmp.eq.s32.totalorder %s29, 1
      %p344 = por %p342, %p343
      %p346 = scmp.ne.s32.totalorder %s331, %s345
      %p347 = scmp.eq.s32.totalorder %s29, 0
      %p348 = por %p346, %p347
      %s349 = ssub.s32 %s30, %s42
      %s350 = ssub.s32 %s31, %s38
      %s351 = sor.u32 %s349, %s350
      %p352 = scmp.eq.s32.totalorder %s351, 0
      %s354 = sadd.s32 %s353, 1
      %s355 = scalar_select %p352, %s353, %s354
      %p358 = pneg %p352
      %p359 = scmp.eq.s32.totalorder %s23, 1
      %p360 = por %p358, %p359
      %p361 = scmp.ne.s32.totalorder %s353, %s356
      %p362 = scmp.eq.s32.totalorder %s23, 0
      %p363 = por %p361, %p362
      %p364 = scmp.ne.s32.totalorder %s353, %s356
      %p365 = scmp.eq.s32.totalorder %s28, 1
      %p366 = por %p364, %p365
      %p367 = scmp.ne.s32.totalorder %s356, %s357
      %p368 = scmp.eq.s32.totalorder %s28, 0
      %p369 = por %p367, %p368
      %p370 = scmp.ne.s32.totalorder %s356, %s357
      %p371 = scmp.eq.s32.totalorder %s29, 1
      %p372 = por %p370, %p371
      %p374 = scmp.ne.s32.totalorder %s357, %s373
      %p375 = scmp.eq.s32.totalorder %s29, 0
      %p376 = por %p374, %p375
      %p377 = scmp.le.s32.totalorder 1, %s23
      %p378 = scmp.lt.s32.totalorder %s23, 3
      %p379 = pnand %p377, %p378
      %p380 = pneg %p379
      // Predicated region
      $region9: #{tpu_custom_call.1} parent=5 // pred_check
        _
      $region10: #{tpu_custom_call.1} parent=5 // pred_check_branch
        %382 = sbr.rel (%p379) target = $region12
      $region11: #{tpu_custom_call.1} parent=5 // pred_region
        %s383 = ssub.s32 %s23, 1
        // Predicated region
        $region13: #{tpu_custom_call.1} parent=11 // pred_check
          %p384 = pneg %p110
        $region14: #{tpu_custom_call.1} parent=11 // pred_check_branch
          %386 = sbr.rel (%p384) target = $region16
        $region15: #{tpu_custom_call.1} parent=11 // pred_region
          _
        $region16: #{tpu_custom_call.1} parent=11 // pred_fallthru
          _
        // Predicated region
        $region17: #{tpu_custom_call.1} parent=11 // pred_check
          %p387 = pneg %p131
        $region18: #{tpu_custom_call.1} parent=11 // pred_check_branch
          %389 = sbr.rel (%p387) target = $region20
        $region19: #{tpu_custom_call.1} parent=11 // pred_region
          _
        $region20: #{tpu_custom_call.1} parent=11 // pred_fallthru
          _
        // Predicated region
        $region21: #{tpu_custom_call.1} parent=11 // pred_check
          %p390 = pneg %p152
        $region22: #{tpu_custom_call.1} parent=11 // pred_check_branch
          %392 = sbr.rel (%p390) target = $region24
        $region23: #{tpu_custom_call.1} parent=11 // pred_region
          _
        $region24: #{tpu_custom_call.1} parent=11 // pred_fallthru
          _
        // Predicated region
        $region25: #{tpu_custom_call.1} parent=11 // pred_check
          %p393 = pneg %p173
        $region26: #{tpu_custom_call.1} parent=11 // pred_check_branch
          %395 = sbr.rel (%p393) target = $region28
        $region27: #{tpu_custom_call.1} parent=11 // pred_region
          _
        $region28: #{tpu_custom_call.1} parent=11 // pred_fallthru
          _
        // Predicated region
        $region29: #{tpu_custom_call.1} parent=11 // pred_check
          %p396 = pneg %p194
        $region30: #{tpu_custom_call.1} parent=11 // pred_check_branch
          %398 = sbr.rel (%p396) target = $region32
        $region31: #{tpu_custom_call.1} parent=11 // pred_region
          _
        $region32: #{tpu_custom_call.1} parent=11 // pred_fallthru
          _
        // Predicated region
        $region33: #{tpu_custom_call.1} parent=11 // pred_check
          %p399 = pneg %p215
        $region34: #{tpu_custom_call.1} parent=11 // pred_check_branch
          %401 = sbr.rel (%p399) target = $region36
        $region35: #{tpu_custom_call.1} parent=11 // pred_region
          _
        $region36: #{tpu_custom_call.1} parent=11 // pred_fallthru
          _
        // Predicated region
        $region37: #{tpu_custom_call.1} parent=11 // pred_check
          %p402 = pneg %p236
        $region38: #{tpu_custom_call.1} parent=11 // pred_check_branch
          %404 = sbr.rel (%p402) target = $region40
        $region39: #{tpu_custom_call.1} parent=11 // pred_region
          _
        $region40: #{tpu_custom_call.1} parent=11 // pred_fallthru
          _
        // Predicated region
        $region41: #{tpu_custom_call.1} parent=11 // pred_check
          %p405 = pneg %p257
        $region42: #{tpu_custom_call.1} parent=11 // pred_check_branch
          %407 = sbr.rel (%p405) target = $region44
        $region43: #{tpu_custom_call.1} parent=11 // pred_region
          _
        $region44: #{tpu_custom_call.1} parent=11 // pred_fallthru
          _
        // Predicated region
        $region45: #{tpu_custom_call.1} parent=11 // pred_check
          %p408 = pneg %p278
        $region46: #{tpu_custom_call.1} parent=11 // pred_check_branch
          %410 = sbr.rel (%p408) target = $region48
        $region47: #{tpu_custom_call.1} parent=11 // pred_region
          _
        $region48: #{tpu_custom_call.1} parent=11 // pred_fallthru
          _
        // Predicated region
        $region49: #{tpu_custom_call.1} parent=11 // pred_check
          %p411 = pneg %p299
        $region50: #{tpu_custom_call.1} parent=11 // pred_check_branch
          %413 = sbr.rel (%p411) target = $region52
        $region51: #{tpu_custom_call.1} parent=11 // pred_region
          _
        $region52: #{tpu_custom_call.1} parent=11 // pred_fallthru
          _
        // Predicated region
        $region53: #{tpu_custom_call.1} parent=11 // pred_check
          %p414 = pneg %p320
        $region54: #{tpu_custom_call.1} parent=11 // pred_check_branch
          %416 = sbr.rel (%p414) target = $region56
        $region55: #{tpu_custom_call.1} parent=11 // pred_region
          _
        $region56: #{tpu_custom_call.1} parent=11 // pred_fallthru
          _
        // Predicated region
        $region57: #{tpu_custom_call.1} parent=11 // pred_check
          %p417 = pneg %p341
        $region58: #{tpu_custom_call.1} parent=11 // pred_check_branch
          %419 = sbr.rel (%p417) target = $region60
        $region59: #{tpu_custom_call.1} parent=11 // pred_region
          _
        $region60: #{tpu_custom_call.1} parent=11 // pred_fallthru
          _
      $region12: #{tpu_custom_call.1} parent=5 // pred_fallthru
        _
      %p420 = scmp.lt.s32.totalorder %s23, 2
      // Predicated region
      $region61: #{tpu_custom_call.1} parent=5 // pred_check
        %p421 = pneg %p420
      $region62: #{tpu_custom_call.1} parent=5 // pred_check_branch
        %423 = sbr.rel (%p421) target = $region64
      $region63: #{tpu_custom_call.1} parent=5 // pred_region
        // Predicated region
        $region65: #{tpu_custom_call.1} parent=63 // pred_check
          %p424 = pneg %p57
        $region66: #{tpu_custom_call.1} parent=63 // pred_check_branch
          %426 = sbr.rel (%p424) target = $region68
        $region67: #{tpu_custom_call.1} parent=63 // pred_region
          %p427 = scmp.lt.s32.totalorder %s30, 1
          %s428 = scalar_select %p427, %s30, 1
          %p429 = scmp.lt.s32.totalorder %s31, 0
          %s430 = scalar_select %p429, %s31, 0
          %s431 = sadd.s32 %s430, %s428
          %s432 = smul.addr %s431, 8
          %s433 = scalar_lea.vmem %s0, %s432
        $region68: #{tpu_custom_call.1} parent=63 // pred_fallthru
          _
        // Predicated region
        $region69: #{tpu_custom_call.1} parent=63 // pred_check
          %p434 = pneg %p83
        $region70: #{tpu_custom_call.1} parent=63 // pred_check_branch
          %436 = sbr.rel (%p434) target = $region72
        $region71: #{tpu_custom_call.1} parent=63 // pred_region
          %p437 = scmp.lt.s32.totalorder %s30, 1
          %s438 = scalar_select %p437, %s30, 1
          %s439 = smul.addr %s438, 8
          %s440 = scalar_lea.vmem %s1, %s439
        $region72: #{tpu_custom_call.1} parent=63 // pred_fallthru
          _
      $region64: #{tpu_custom_call.1} parent=5 // pred_fallthru
        _
      %p441 = scmp.le.s32.totalorder 1, %s23
      %p442 = scmp.lt.s32.totalorder %s23, 3
      %p443 = pnand %p441, %p442
      %p444 = pneg %p443
      // Predicated region
      $region73: #{tpu_custom_call.1} parent=5 // pred_check
        _
      $region74: #{tpu_custom_call.1} parent=5 // pred_check_branch
        %446 = sbr.rel (%p443) target = $region76
      $region75: #{tpu_custom_call.1} parent=5 // pred_region
        %s447 = ssub.s32 %s23, 1
        %p448 = scmp.lt.s32.totalorder %s32, 1
        %s449 = scalar_select %p448, %s32, 1
        %p450 = scmp.lt.s32.totalorder %s33, 0
        %s451 = scalar_select %p450, %s33, 0
        %s452 = sadd.s32 %s451, %s449
        %s453 = smul.addr %s452, 8
        %s454 = scalar_lea.vmem %s0, %s453
        %p455 = pneg %p63
        %p456 = pneg %p60
        %p457 = scmp.lt.s32.totalorder %s32, 1
        %s458 = scalar_select %p457, %s32, 1
        %s459 = smul.addr %s458, 8
        %s460 = scalar_lea.vmem %s1, %s459
        %p461 = pneg %p89
        %p462 = pneg %p86
        %p463 = pneg %p110
        %p464 = pneg %p107
        %p465 = pneg %p131
        %p466 = pneg %p128
        %p467 = pneg %p152
        %p468 = pneg %p149
        %p469 = pneg %p173
        %p470 = pneg %p170
        %p471 = pneg %p194
        %p472 = pneg %p191
        %p473 = pneg %p215
        %p474 = pneg %p212
        %p475 = pneg %p236
        %p476 = pneg %p233
        %p477 = pneg %p257
        %p478 = pneg %p254
        %p479 = pneg %p278
        %p480 = pneg %p275
        %p481 = pneg %p299
        %p482 = pneg %p296
        %p483 = pneg %p320
        %p484 = pneg %p317
        %p485 = pneg %p341
        %p486 = pneg %p338
        %p487 = pneg %p369
        %p488 = pneg %p366
        %s489 = sand.u32 %s356, 1
        %s490 = scalar_lea.sflag [#allocation3], %s489
        %s491 = sand.u32 %s356, 1
        %s492 = smul.addr %s491, 8
        %s493 = scalar_lea.vmem [#allocation2], %s492
        %p494 = scmp.lt.s32.totalorder %s32, 1
        %s495 = scalar_select %p494, %s32, 1
        %p496 = scmp.lt.s32.totalorder %s33, 0
        %s497 = scalar_select %p496, %s33, 0
        %s498 = sadd.s32 %s497, %s495
        %s499 = smul.addr %s498, 8
        %s500 = scalar_lea.vmem %s0, %s499
        %p501 = scmp.lt.s32.totalorder %s32, 1
        %s502 = scalar_select %p501, %s32, 1
        %s503 = smul.addr %s502, 8
        %s504 = scalar_lea.vmem %s1, %s503
        %v506 = vld [vmem:[%s500] sm:$0xff]
        %v507 = vld [vmem:[%s504] sm:$0xff]
        %vm508 = vcmask 261120
        %v509 = vsel %vm508, %v506, 0.0
        %510 = vadd.xlane.f32.xlu0 %v509
        %v511 = vpop.xlane.xlu0 %510
        %v512 = vrcp.pop 32.0
        %v513 = vmul.f32 %v511, %v512
        %v514 = vsub.f32 %v506, %v513
        %v515 = vmul.f32 %v514, %v514
        %v516 = vsel %vm508, %v515, 0.0
        %517 = vadd.xlane.f32.xlu0 %v516
        %v518 = vpop.xlane.xlu0 %517
        %v519 = vmul.f32 %v518, %v512
        %v520 = vadd.f32 %v519, 1e-05
        %v521 = vrsqrt.pop %v520
        %v522 = vmul.f32 %v514, %v521
        %v523 = vld [vmem:[%s2] sm:$0x1]
        %v525 = vlaneseq
        %v526 = vshrl.u32 %v525, 7
        %v527 = vsub.s32 0, %v526
        %v528 = vrot.slane %v523, %v527
        %v530 = vmul.f32 %v522, %v528
        %v531 = vld [vmem:[%s3] sm:$0x1]
        %v533 = vlaneseq
        %v534 = vshrl.u32 %v533, 7
        %v535 = vsub.s32 0, %v534
        %v536 = vrot.slane %v531, %v535
        %v538 = vadd.f32 %v530, %v536
        %v539 = vsel %vm508, %v507, 0.0
        %540 = vadd.xlane.f32.xlu0 %v539
        %v541 = vpop.xlane.xlu0 %540
        %v542 = vmul.f32 %v541, %v512
        %v543 = vsub.f32 %v507, %v542
        %v544 = vmul.f32 %v543, %v543
        %v545 = vsel %vm508, %v544, 0.0
        %546 = vadd.xlane.f32.xlu0 %v545
        %v547 = vpop.xlane.xlu0 %546
        %v548 = vmul.f32 %v547, %v512
        %v549 = vadd.f32 %v548, 1e-05
        %v550 = vrsqrt.pop %v549
        %v551 = vmul.f32 %v543, %v550
        %v552 = vmul.f32 %v551, %v528
        %v553 = vadd.f32 %v552, %v536
        %v554 = vld [vmem:[%s4] sm:$0xf]
        %v555 = vld [vmem:[%s4 + $0x4] sm:$0xf]
        %v556 = vld [vmem:[%s4 + $0x8] sm:$0xf]
        %v557 = vld [vmem:[%s4 + $0xc] sm:$0xf]
        %v558 = vpack.c.bf16 %v538, %v538
        %v563 = vunpack.c.l.b16 %v554
        %v564 = vunpack.c.l.b16 %v555
        %v565 = vunpack.c.l.b16 %v556
        %v566 = vunpack.c.l.b16 %v557
        %v567 = vpack.c.b16 %v564, %v563
        %v568 = vpack.c.b16 %v566, %v565
        %v570 = vsel %vm508, %v567, 0
        %v573 = vsel %vm508, %v568, 0
        %v576 = vsel %vm508, %v558, 0
        %578 = vmatprep.subr.bf16.mxu0 0
        %579 = vmatpush1.bf16.xpose.msra.mxu0 %v576
        %580 = vmatprep.subr.bf16.mxu0 0
        %581 = vmatpush1.bf16.xpose.msra.mxu0 0
        %582 = vmatprep.subr.bf16.mxu0 0
        %583 = vmatpush1.bf16.xpose.msra.mxu0 0
        %584 = vmatprep.subr.bf16.mxu0 0
        %585 = vmatpush1.bf16.xpose.msra.mxu0 0
        %586 = vmatprep.subr.bf16.mxu0 0
        %587 = vmatpush1.bf16.xpose.msra.mxu0 0
        %588 = vmatprep.subr.bf16.mxu0 0
        %589 = vmatpush1.bf16.xpose.msra.mxu0 0
        %590 = vmatprep.subr.bf16.mxu0 0
        %591 = vmatpush1.bf16.xpose.msra.mxu0 0
        %592 = vmatprep.subr.bf16.mxu0 0
        %593 = vmatpush1.bf16.xpose.msra.mxu0 0
        %594 = vmatprep.subr.bf16.mxu0 0
        %595 = vmatpush1.bf16.xpose.msra.mxu0 0
        %596 = vmatprep.subr.bf16.mxu0 0
        %597 = vmatpush1.bf16.xpose.msra.mxu0 0
        %598 = vmatprep.subr.bf16.mxu0 0
        %599 = vmatpush1.bf16.xpose.msra.mxu0 0
        %600 = vmatprep.subr.bf16.mxu0 0
        %601 = vmatpush1.bf16.xpose.msra.mxu0 0
        %602 = vmatprep.subr.bf16.mxu0 0
        %603 = vmatpush1.bf16.xpose.msra.mxu0 0
        %604 = vmatprep.subr.bf16.mxu0 0
        %605 = vmatpush1.bf16.xpose.msra.mxu0 0
        %606 = vmatprep.subr.bf16.mxu0 0
        %607 = vmatpush1.bf16.xpose.msra.mxu0 0
        %608 = vmatprep.subr.bf16.mxu0 0
        %609 = vmatpush1.bf16.xpose.msra.mxu0 0
        %610 = vmatprep.mubr.bf16.mxu0 0
        %611 = vmatmul.mubr.bf16.gmra.mrb[0].mxu0 %v570
        %v612 = vpop.f32.mrb[0].mxu0
        %v613 = vadd.f32 0.0, %v612
        %v614 = vpop.f32.mrb[0].mxu0
        %v615 = vpop.f32.mrb[0].mxu0
        %v616 = vadd.f32 0.0, %v615
        %v617 = vpop.f32.mrb[0].mxu0
        %618 = vmatprep.mubr.bf16.mxu0 0
        %619 = vmatmul.mubr.bf16.gmra.mrb[0].mxu0 %v573
        %v620 = vpop.f32.mrb[0].mxu0
        %v621 = vadd.f32 0.0, %v620
        %v622 = vpop.f32.mrb[0].mxu0
        %v623 = vpop.f32.mrb[0].mxu0
        %v624 = vadd.f32 0.0, %v623
        %v625 = vpop.f32.mrb[0].mxu0
        %626 = vdwg.mxu0
        %v627 = vld [vmem:[%s5] sm:$0xf]
        %v628 = vld [vmem:[%s5 + $0x4] sm:$0xf]
        %v629 = vld [vmem:[%s5 + $0x8] sm:$0xf]
        %v630 = vld [vmem:[%s5 + $0xc] sm:$0xf]
        %v631 = vld [vmem:[%s5 + $0x10] sm:$0xf]
        %v632 = vld [vmem:[%s5 + $0x14] sm:$0xf]
        %v633 = vld [vmem:[%s5 + $0x18] sm:$0xf]
        %v634 = vld [vmem:[%s5 + $0x1c] sm:$0xf]
        %v635 = vpack.c.bf16 %v553, %v553
        %v644 = vunpack.c.l.b16 %v627
        %v645 = vunpack.c.l.b16 %v628
        %v646 = vunpack.c.l.b16 %v629
        %v647 = vunpack.c.l.b16 %v630
        %v648 = vunpack.c.l.b16 %v631
        %v649 = vunpack.c.l.b16 %v632
        %v650 = vunpack.c.l.b16 %v633
        %v651 = vunpack.c.l.b16 %v634
        %v652 = vpack.c.b16 %v645, %v644
        %v653 = vpack.c.b16 %v647, %v646
        %v654 = vpack.c.b16 %v649, %v648
        %v655 = vpack.c.b16 %v651, %v650
        %v657 = vsel %vm508, %v652, 0
        %v660 = vsel %vm508, %v653, 0
        %v663 = vsel %vm508, %v654, 0
        %v666 = vsel %vm508, %v655, 0
        %v669 = vsel %vm508, %v635, 0
        %671 = vmatprep.subr.bf16.mxu0 0
        %672 = vmatpush1.bf16.xpose.msra.mxu0 %v669
        %673 = vmatprep.subr.bf16.mxu0 0
        %674 = vmatpush1.bf16.xpose.msra.mxu0 0
        %675 = vmatprep.subr.bf16.mxu0 0
        %676 = vmatpush1.bf16.xpose.msra.mxu0 0
        %677 = vmatprep.subr.bf16.mxu0 0
        %678 = vmatpush1.bf16.xpose.msra.mxu0 0
        %679 = vmatprep.subr.bf16.mxu0 0
        %680 = vmatpush1.bf16.xpose.msra.mxu0 0
        %681 = vmatprep.subr.bf16.mxu0 0
        %682 = vmatpush1.bf16.xpose.msra.mxu0 0
        %683 = vmatprep.subr.bf16.mxu0 0
        %684 = vmatpush1.bf16.xpose.msra.mxu0 0
        %685 = vmatprep.subr.bf16.mxu0 0
        %686 = vmatpush1.bf16.xpose.msra.mxu0 0
        %687 = vmatprep.subr.bf16.mxu0 0
        %688 = vmatpush1.bf16.xpose.msra.mxu0 0
        %689 = vmatprep.subr.bf16.mxu0 0
        %690 = vmatpush1.bf16.xpose.msra.mxu0 0
        %691 = vmatprep.subr.bf16.mxu0 0
        %692 = vmatpush1.bf16.xpose.msra.mxu0 0
        %693 = vmatprep.subr.bf16.mxu0 0
        %694 = vmatpush1.bf16.xpose.msra.mxu0 0
        %695 = vmatprep.subr.bf16.mxu0 0
        %696 = vmatpush1.bf16.xpose.msra.mxu0 0
        %697 = vmatprep.subr.bf16.mxu0 0
        %698 = vmatpush1.bf16.xpose.msra.mxu0 0
        %699 = vmatprep.subr.bf16.mxu0 0
        %700 = vmatpush1.bf16.xpose.msra.mxu0 0
        %701 = vmatprep.subr.bf16.mxu0 0
        %702 = vmatpush1.bf16.xpose.msra.mxu0 0
        %703 = vmatprep.mubr.bf16.mxu0 0
        %704 = vmatmul.mubr.bf16.gmra.mrb[0].mxu0 %v657
        %v705 = vpop.f32.mrb[0].mxu0
        %v706 = vadd.f32 0.0, %v705
        %v707 = vpop.f32.mrb[0].mxu0
        %v708 = vpop.f32.mrb[0].mxu0
        %v709 = vadd.f32 0.0, %v708
        %v710 = vpop.f32.mrb[0].mxu0
        %711 = vmatprep.mubr.bf16.mxu0 0
        %712 = vmatmul.mubr.bf16.gmra.mrb[0].mxu0 %v660
        %v713 = vpop.f32.mrb[0].mxu0
        %v714 = vadd.f32 0.0, %v713
        %v715 = vpop.f32.mrb[0].mxu0
        %v716 = vpop.f32.mrb[0].mxu0
        %v717 = vadd.f32 0.0, %v716
        %v718 = vpop.f32.mrb[0].mxu0
        %719 = vmatprep.mubr.bf16.mxu0 0
        %720 = vmatmul.mubr.bf16.gmra.mrb[0].mxu0 %v663
        %v721 = vpop.f32.mrb[0].mxu0
        %v722 = vadd.f32 0.0, %v721
        %v723 = vpop.f32.mrb[0].mxu0
        %v724 = vpop.f32.mrb[0].mxu0
        %v725 = vadd.f32 0.0, %v724
        %v726 = vpop.f32.mrb[0].mxu0
        %727 = vmatprep.mubr.bf16.mxu0 0
        %728 = vmatmul.mubr.bf16.gmra.mrb[0].mxu0 %v666
        %v729 = vpop.f32.mrb[0].mxu0
        %v730 = vadd.f32 0.0, %v729
        %v731 = vpop.f32.mrb[0].mxu0
        %v732 = vpop.f32.mrb[0].mxu0
        %v733 = vadd.f32 0.0, %v732
        %v734 = vpop.f32.mrb[0].mxu0
        %735 = vdwg.mxu0
        %v736 = vpack.c.bf16 %v613, %v613
        %v737 = vpack.c.bf16 %v616, %v616
        %v738 = vpack.c.bf16 %v621, %v621
        %v739 = vpack.c.bf16 %v624, %v624
        %v740 = vpack.c.bf16 %v706, %v706
        %v741 = vpack.c.bf16 %v709, %v709
        %v742 = vpack.c.bf16 %v714, %v714
        %v743 = vpack.c.bf16 %v717, %v717
        %744 = vxpose.xlu0.c.b16.start [1/8] %v736, 128
        %745 = vxpose.xlu0.c.b16.cont [2/8] 0, 128
        %746 = vxpose.xlu0.c.b16.cont [3/8] 0, 128
        %747 = vxpose.xlu0.c.b16.cont [4/8] 0, 128
        %748 = vxpose.xlu0.c.b16.cont [5/8] 0, 128
        %749 = vxpose.xlu0.c.b16.cont [6/8] 0, 128
        %750 = vxpose.xlu0.c.b16.cont [7/8] 0, 128
        %751 = vxpose.xlu0.c.b16.end [8/8] 0, 128
        %v752 = vpop.trf.xlu0
        %v753 = vpop.trf.xlu0
        %v754 = vpop.trf.xlu0
        %v755 = vpop.trf.xlu0
        %v756 = vpop.trf.xlu0
        %v757 = vpop.trf.xlu0
        %v758 = vpop.trf.xlu0
        %v759 = vpop.trf.xlu0
        %vm760 = vcmask 64512
        %v762 = vsel %vm760, %v752, 0
        %vm764 = vcmask 1043456
        %v766 = vsel %vm764, %v740, 0
        %768 = vmatprep.subr.bf16.mxu0 0
        %769 = vmatpush1.bf16.msra.mxu0 %v766
        %770 = vmatprep.subr.bf16.mxu0 0
        %771 = vmatpush1.bf16.msra.mxu0 0
        %772 = vmatprep.subr.bf16.mxu0 0
        %773 = vmatpush1.bf16.msra.mxu0 0
        %774 = vmatprep.subr.bf16.mxu0 0
        %775 = vmatpush1.bf16.msra.mxu0 0
        %776 = vmatprep.subr.bf16.mxu0 0
        %777 = vmatpush1.bf16.msra.mxu0 0
        %778 = vmatprep.subr.bf16.mxu0 0
        %779 = vmatpush1.bf16.msra.mxu0 0
        %780 = vmatprep.subr.bf16.mxu0 0
        %781 = vmatpush1.bf16.msra.mxu0 0
        %782 = vmatprep.subr.bf16.mxu0 0
        %783 = vmatpush1.bf16.msra.mxu0 0
        %784 = vmatprep.subr.bf16.mxu0 0
        %785 = vmatpush1.bf16.msra.mxu0 0
        %786 = vmatprep.subr.bf16.mxu0 0
        %787 = vmatpush1.bf16.msra.mxu0 0
        %788 = vmatprep.subr.bf16.mxu0 0
        %789 = vmatpush1.bf16.msra.mxu0 0
        %790 = vmatprep.subr.bf16.mxu0 0
        %791 = vmatpush1.bf16.msra.mxu0 0
        %792 = vmatprep.subr.bf16.mxu0 0
        %793 = vmatpush1.bf16.msra.mxu0 0
        %794 = vmatprep.subr.bf16.mxu0 0
        %795 = vmatpush1.bf16.msra.mxu0 0
        %796 = vmatprep.subr.bf16.mxu0 0
        %797 = vmatpush1.bf16.msra.mxu0 0
        %798 = vmatprep.subr.bf16.mxu0 0
        %799 = vmatpush1.bf16.msra.mxu0 0
        %800 = vmatprep.mubr.bf16.mxu0 0
        %801 = vmatmul.mubr.bf16.gmra.mrb[0].mxu0 %v762
        %v802 = vpop.f32.mrb[0].mxu0
        %v803 = vadd.f32 0.0, %v802
        %v804 = vpop.f32.mrb[0].mxu0
        %v805 = vpop.f32.mrb[0].mxu0
        %v806 = vpop.f32.mrb[0].mxu0
        %807 = vdwg.mxu0
        %808 = vxpose.xlu0.c.b16.start [1/8] %v737, 128
        %809 = vxpose.xlu0.c.b16.cont [2/8] 0, 128
        %810 = vxpose.xlu0.c.b16.cont [3/8] 0, 128
        %811 = vxpose.xlu0.c.b16.cont [4/8] 0, 128
        %812 = vxpose.xlu0.c.b16.cont [5/8] 0, 128
        %813 = vxpose.xlu0.c.b16.cont [6/8] 0, 128
        %814 = vxpose.xlu0.c.b16.cont [7/8] 0, 128
        %815 = vxpose.xlu0.c.b16.end [8/8] 0, 128
        %v816 = vpop.trf.xlu0
        %v817 = vpop.trf.xlu0
        %v818 = vpop.trf.xlu0
        %v819 = vpop.trf.xlu0
        %v820 = vpop.trf.xlu0
        %v821 = vpop.trf.xlu0
        %v822 = vpop.trf.xlu0
        %v823 = vpop.trf.xlu0
        %v825 = vsel %vm760, %v816, 0
        %v828 = vsel %vm764, %v741, 0
        %830 = vmatprep.subr.bf16.mxu0 0
        %831 = vmatpush1.bf16.msra.mxu0 %v828
        %832 = vmatprep.subr.bf16.mxu0 0
        %833 = vmatpush1.bf16.msra.mxu0 0
        %834 = vmatprep.subr.bf16.mxu0 0
        %835 = vmatpush1.bf16.msra.mxu0 0
        %836 = vmatprep.subr.bf16.mxu0 0
        %837 = vmatpush1.bf16.msra.mxu0 0
        %838 = vmatprep.subr.bf16.mxu0 0
        %839 = vmatpush1.bf16.msra.mxu0 0
        %840 = vmatprep.subr.bf16.mxu0 0
        %841 = vmatpush1.bf16.msra.mxu0 0
        %842 = vmatprep.subr.bf16.mxu0 0
        %843 = vmatpush1.bf16.msra.mxu0 0
        %844 = vmatprep.subr.bf16.mxu0 0
        %845 = vmatpush1.bf16.msra.mxu0 0
        %846 = vmatprep.subr.bf16.mxu0 0
        %847 = vmatpush1.bf16.msra.mxu0 0
        %848 = vmatprep.subr.bf16.mxu0 0
        %849 = vmatpush1.bf16.msra.mxu0 0
        %850 = vmatprep.subr.bf16.mxu0 0
        %851 = vmatpush1.bf16.msra.mxu0 0
        %852 = vmatprep.subr.bf16.mxu0 0
        %853 = vmatpush1.bf16.msra.mxu0 0
        %854 = vmatprep.subr.bf16.mxu0 0
        %855 = vmatpush1.bf16.msra.mxu0 0
        %856 = vmatprep.subr.bf16.mxu0 0
        %857 = vmatpush1.bf16.msra.mxu0 0
        %858 = vmatprep.subr.bf16.mxu0 0
        %859 = vmatpush1.bf16.msra.mxu0 0
        %860 = vmatprep.subr.bf16.mxu0 0
        %861 = vmatpush1.bf16.msra.mxu0 0
        %862 = vmatprep.mubr.bf16.mxu0 0
        %863 = vmatmul.mubr.bf16.gmra.mrb[0].mxu0 %v825
        %v864 = vpop.f32.mrb[0].mxu0
        %v865 = vadd.f32 0.0, %v864
        %v866 = vpop.f32.mrb[0].mxu0
        %v867 = vpop.f32.mrb[0].mxu0
        %v868 = vpop.f32.mrb[0].mxu0
        %869 = vdwg.mxu0
        %870 = vxpose.xlu0.c.b16.start [1/8] %v738, 128
        %871 = vxpose.xlu0.c.b16.cont [2/8] 0, 128
        %872 = vxpose.xlu0.c.b16.cont [3/8] 0, 128
        %873 = vxpose.xlu0.c.b16.cont [4/8] 0, 128
        %874 = vxpose.xlu0.c.b16.cont [5/8] 0, 128
        %875 = vxpose.xlu0.c.b16.cont [6/8] 0, 128
        %876 = vxpose.xlu0.c.b16.cont [7/8] 0, 128
        %877 = vxpose.xlu0.c.b16.end [8/8] 0, 128
        %v878 = vpop.trf.xlu0
        %v879 = vpop.trf.xlu0
        %v880 = vpop.trf.xlu0
        %v881 = vpop.trf.xlu0
        %v882 = vpop.trf.xlu0
        %v883 = vpop.trf.xlu0
        %v884 = vpop.trf.xlu0
        %v885 = vpop.trf.xlu0
        %v887 = vsel %vm760, %v878, 0
        %v890 = vsel %vm764, %v742, 0
        %892 = vmatprep.subr.bf16.mxu0 0
        %893 = vmatpush1.bf16.msra.mxu0 %v890
        %894 = vmatprep.subr.bf16.mxu0 0
        %895 = vmatpush1.bf16.msra.mxu0 0
        %896 = vmatprep.subr.bf16.mxu0 0
        %897 = vmatpush1.bf16.msra.mxu0 0
        %898 = vmatprep.subr.bf16.mxu0 0
        %899 = vmatpush1.bf16.msra.mxu0 0
        %900 = vmatprep.subr.bf16.mxu0 0
        %901 = vmatpush1.bf16.msra.mxu0 0
        %902 = vmatprep.subr.bf16.mxu0 0
        %903 = vmatpush1.bf16.msra.mxu0 0
        %904 = vmatprep.subr.bf16.mxu0 0
        %905 = vmatpush1.bf16.msra.mxu0 0
        %906 = vmatprep.subr.bf16.mxu0 0
        %907 = vmatpush1.bf16.msra.mxu0 0
        %908 = vmatprep.subr.bf16.mxu0 0
        %909 = vmatpush1.bf16.msra.mxu0 0
        %910 = vmatprep.subr.bf16.mxu0 0
        %911 = vmatpush1.bf16.msra.mxu0 0
        %912 = vmatprep.subr.bf16.mxu0 0
        %913 = vmatpush1.bf16.msra.mxu0 0
        %914 = vmatprep.subr.bf16.mxu0 0
        %915 = vmatpush1.bf16.msra.mxu0 0
        %916 = vmatprep.subr.bf16.mxu0 0
        %917 = vmatpush1.bf16.msra.mxu0 0
        %918 = vmatprep.subr.bf16.mxu0 0
        %919 = vmatpush1.bf16.msra.mxu0 0
        %920 = vmatprep.subr.bf16.mxu0 0
        %921 = vmatpush1.bf16.msra.mxu0 0
        %922 = vmatprep.subr.bf16.mxu0 0
        %923 = vmatpush1.bf16.msra.mxu0 0
        %924 = vmatprep.mubr.bf16.mxu0 0
        %925 = vmatmul.mubr.bf16.gmra.mrb[0].mxu0 %v887
        %v926 = vpop.f32.mrb[0].mxu0
        %v927 = vadd.f32 0.0, %v926
        %v928 = vpop.f32.mrb[0].mxu0
        %v929 = vpop.f32.mrb[0].mxu0
        %v930 = vpop.f32.mrb[0].mxu0
        %931 = vdwg.mxu0
        %932 = vxpose.xlu0.c.b16.start [1/8] %v739, 128
        %933 = vxpose.xlu0.c.b16.cont [2/8] 0, 128
        %934 = vxpose.xlu0.c.b16.cont [3/8] 0, 128
        %935 = vxpose.xlu0.c.b16.cont [4/8] 0, 128
        %936 = vxpose.xlu0.c.b16.cont [5/8] 0, 128
        %937 = vxpose.xlu0.c.b16.cont [6/8] 0, 128
        %938 = vxpose.xlu0.c.b16.cont [7/8] 0, 128
        %939 = vxpose.xlu0.c.b16.end [8/8] 0, 128
        %v940 = vpop.trf.xlu0
        %v941 = vpop.trf.xlu0
        %v942 = vpop.trf.xlu0
        %v943 = vpop.trf.xlu0
        %v944 = vpop.trf.xlu0
        %v945 = vpop.trf.xlu0
        %v946 = vpop.trf.xlu0
        %v947 = vpop.trf.xlu0
        %v949 = vsel %vm760, %v940, 0
        %v952 = vsel %vm764, %v743, 0
        %954 = vmatprep.subr.bf16.mxu0 0
        %955 = vmatpush1.bf16.msra.mxu0 %v952
        %956 = vmatprep.subr.bf16.mxu0 0
        %957 = vmatpush1.bf16.msra.mxu0 0
        %958 = vmatprep.subr.bf16.mxu0 0
        %959 = vmatpush1.bf16.msra.mxu0 0
        %960 = vmatprep.subr.bf16.mxu0 0
        %961 = vmatpush1.bf16.msra.mxu0 0
        %962 = vmatprep.subr.bf16.mxu0 0
        %963 = vmatpush1.bf16.msra.mxu0 0
        %964 = vmatprep.subr.bf16.mxu0 0
        %965 = vmatpush1.bf16.msra.mxu0 0
        %966 = vmatprep.subr.bf16.mxu0 0
        %967 = vmatpush1.bf16.msra.mxu0 0
        %968 = vmatprep.subr.bf16.mxu0 0
        %969 = vmatpush1.bf16.msra.mxu0 0
        %970 = vmatprep.subr.bf16.mxu0 0
        %971 = vmatpush1.bf16.msra.mxu0 0
        %972 = vmatprep.subr.bf16.mxu0 0
        %973 = vmatpush1.bf16.msra.mxu0 0
        %974 = vmatprep.subr.bf16.mxu0 0
        %975 = vmatpush1.bf16.msra.mxu0 0
        %976 = vmatprep.subr.bf16.mxu0 0
        %977 = vmatpush1.bf16.msra.mxu0 0
        %978 = vmatprep.subr.bf16.mxu0 0
        %979 = vmatpush1.bf16.msra.mxu0 0
        %980 = vmatprep.subr.bf16.mxu0 0
        %981 = vmatpush1.bf16.msra.mxu0 0
        %982 = vmatprep.subr.bf16.mxu0 0
        %983 = vmatpush1.bf16.msra.mxu0 0
        %984 = vmatprep.subr.bf16.mxu0 0
        %985 = vmatpush1.bf16.msra.mxu0 0
        %986 = vmatprep.mubr.bf16.mxu0 0
        %987 = vmatmul.mubr.bf16.gmra.mrb[0].mxu0 %v949
        %v988 = vpop.f32.mrb[0].mxu0
        %v989 = vadd.f32 0.0, %v988
        %v990 = vpop.f32.mrb[0].mxu0
        %v991 = vpop.f32.mrb[0].mxu0
        %v992 = vpop.f32.mrb[0].mxu0
        %993 = vdwg.mxu0
        %v994 = vsel %vm760, %v803, -inf
        %995 = vmax.xlane.f32.xlu0 %v994
        %v996 = vpop.xlane.xlu0 %995
        %v997 = vsel %vm760, %v865, -inf
        %998 = vmax.xlane.f32.xlu0 %v997
        %v999 = vpop.xlane.xlu0 %998
        %v1000 = vsel %vm760, %v927, -inf
        %1001 = vmax.xlane.f32.xlu0 %v1000
        %v1002 = vpop.xlane.xlu0 %1001
        %v1003 = vsel %vm760, %v989, -inf
        %1004 = vmax.xlane.f32.xlu0 %v1003
        %v1005 = vpop.xlane.xlu0 %1004
        %v1006 = vsub.f32 %v803, %v996
        %v1007 = vsub.f32 %v865, %v999
        %v1008 = vsub.f32 %v927, %v1002
        %v1009 = vsub.f32 %v989, %v1005
        %v1010 = vmul.f32 %v1006, 1.442695
        %v1011 = vpow.pop %v1010
        %v1012 = vmul.f32 %v1007, 1.442695
        %v1013 = vpow.pop %v1012
        %v1014 = vmul.f32 %v1008, 1.442695
        %v1015 = vpow.pop %v1014
        %v1016 = vmul.f32 %v1009, 1.442695
        %v1017 = vpow.pop %v1016
        %v1018 = vsel %vm760, %v1011, 0.0
        %1019 = vadd.xlane.f32.xlu0 %v1018
        %v1020 = vpop.xlane.xlu0 %1019
        %v1021 = vsel %vm760, %v1013, 0.0
        %1022 = vadd.xlane.f32.xlu0 %v1021
        %v1023 = vpop.xlane.xlu0 %1022
        %v1024 = vsel %vm760, %v1015, 0.0
        %1025 = vadd.xlane.f32.xlu0 %v1024
        %v1026 = vpop.xlane.xlu0 %1025
        %v1027 = vsel %vm760, %v1017, 0.0
        %1028 = vadd.xlane.f32.xlu0 %v1027
        %v1029 = vpop.xlane.xlu0 %1028
        %v1030 = vrcp.pop %v1020
        %v1031 = vrcp.pop %v1023
        %v1032 = vrcp.pop %v1026
        %v1033 = vrcp.pop %v1029
        %v1034 = vmul.f32 %v1011, %v1030
        %v1035 = vmul.f32 %v1013, %v1031
        %v1036 = vmul.f32 %v1015, %v1032
        %v1037 = vmul.f32 %v1017, %v1033
        %v1038 = vpack.c.bf16 %v722, %v722
        %v1039 = vpack.c.bf16 %v725, %v725
        %v1040 = vpack.c.bf16 %v730, %v730
        %v1041 = vpack.c.bf16 %v733, %v733
        %v1042 = vpack.c.bf16 %v1034, %v1034
        %v1043 = vpack.c.bf16 %v1035, %v1035
        %v1044 = vpack.c.bf16 %v1036, %v1036
        %v1045 = vpack.c.bf16 %v1037, %v1037
        %v1047 = vsel %vm760, %v1038, 0
        %v1050 = vsel %vm760, %v1042, 0
        %1052 = vmatprep.subr.bf16.mxu0 0
        %1053 = vmatpush1.bf16.xpose.msra.mxu0 %v1050
        %1054 = vmatprep.subr.bf16.mxu0 0
        %1055 = vmatpush1.bf16.xpose.msra.mxu0 0
        %1056 = vmatprep.subr.bf16.mxu0 0
        %1057 = vmatpush1.bf16.xpose.msra.mxu0 0
        %1058 = vmatprep.subr.bf16.mxu0 0
        %1059 = vmatpush1.bf16.xpose.msra.mxu0 0
        %1060 = vmatprep.subr.bf16.mxu0 0
        %1061 = vmatpush1.bf16.xpose.msra.mxu0 0
        %1062 = vmatprep.subr.bf16.mxu0 0
        %1063 = vmatpush1.bf16.xpose.msra.mxu0 0
        %1064 = vmatprep.subr.bf16.mxu0 0
        %1065 = vmatpush1.bf16.xpose.msra.mxu0 0
        %1066 = vmatprep.subr.bf16.mxu0 0
        %1067 = vmatpush1.bf16.xpose.msra.mxu0 0
        %1068 = vmatprep.subr.bf16.mxu0 0
        %1069 = vmatpush1.bf16.xpose.msra.mxu0 0
        %1070 = vmatprep.subr.bf16.mxu0 0
        %1071 = vmatpush1.bf16.xpose.msra.mxu0 0
        %1072 = vmatprep.subr.bf16.mxu0 0
        %1073 = vmatpush1.bf16.xpose.msra.mxu0 0
        %1074 = vmatprep.subr.bf16.mxu0 0
        %1075 = vmatpush1.bf16.xpose.msra.mxu0 0
        %1076 = vmatprep.subr.bf16.mxu0 0
        %1077 = vmatpush1.bf16.xpose.msra.mxu0 0
        %1078 = vmatprep.subr.bf16.mxu0 0
        %1079 = vmatpush1.bf16.xpose.msra.mxu0 0
        %1080 = vmatprep.subr.bf16.mxu0 0
        %1081 = vmatpush1.bf16.xpose.msra.mxu0 0
        %1082 = vmatprep.subr.bf16.mxu0 0
        %1083 = vmatpush1.bf16.xpose.msra.mxu0 0
        %1084 = vmatprep.mubr.bf16.mxu0 0
        %1085 = vmatmul.mubr.bf16.gmra.mrb[0].mxu0 %v1047
        %v1086 = vpop.f32.mrb[0].mxu0
        %v1087 = vadd.f32 0.0, %v1086
        %v1088 = vpop.f32.mrb[0].mxu0
        %v1089 = vpop.f32.mrb[0].mxu0
        %v1090 = vpop.f32.mrb[0].mxu0
        %1091 = vdwg.mxu0
        %v1093 = vsel %vm760, %v1039, 0
        %v1096 = vsel %vm760, %v1043, 0
        %1098 = vmatprep.subr.bf16.mxu0 0
        %1099 = vmatpush1.bf16.xpose.msra.mxu0 %v1096
        %1100 = vmatprep.subr.bf16.mxu0 0
        %1101 = vmatpush1.bf16.xpose.msra.mxu0 0
        %1102 = vmatprep.subr.bf16.mxu0 0
        %1103 = vmatpush1.bf16.xpose.msra.mxu0 0
        %1104 = vmatprep.subr.bf16.mxu0 0
        %1105 = vmatpush1.bf16.xpose.msra.mxu0 0
        %1106 = vmatprep.subr.bf16.mxu0 0
        %1107 = vmatpush1.bf16.xpose.msra.mxu0 0
        %1108 = vmatprep.subr.bf16.mxu0 0
        %1109 = vmatpush1.bf16.xpose.msra.mxu0 0
        %1110 = vmatprep.subr.bf16.mxu0 0
        %1111 = vmatpush1.bf16.xpose.msra.mxu0 0
        %1112 = vmatprep.subr.bf16.mxu0 0
        %1113 = vmatpush1.bf16.xpose.msra.mxu0 0
        %1114 = vmatprep.subr.bf16.mxu0 0
        %1115 = vmatpush1.bf16.xpose.msra.mxu0 0
        %1116 = vmatprep.subr.bf16.mxu0 0
        %1117 = vmatpush1.bf16.xpose.msra.mxu0 0
        %1118 = vmatprep.subr.bf16.mxu0 0
        %1119 = vmatpush1.bf16.xpose.msra.mxu0 0
        %1120 = vmatprep.subr.bf16.mxu0 0
        %1121 = vmatpush1.bf16.xpose.msra.mxu0 0
        %1122 = vmatprep.subr.bf16.mxu0 0
        %1123 = vmatpush1.bf16.xpose.msra.mxu0 0
        %1124 = vmatprep.subr.bf16.mxu0 0
        %1125 = vmatpush1.bf16.xpose.msra.mxu0 0
        %1126 = vmatprep.subr.bf16.mxu0 0
        %1127 = vmatpush1.bf16.xpose.msra.mxu0 0
        %1128 = vmatprep.subr.bf16.mxu0 0
        %1129 = vmatpush1.bf16.xpose.msra.mxu0 0
        %1130 = vmatprep.mubr.bf16.mxu0 0
        %1131 = vmatmul.mubr.bf16.gmra.mrb[0].mxu0 %v1093
        %v1132 = vpop.f32.mrb[0].mxu0
        %v1133 = vadd.f32 0.0, %v1132
        %v1134 = vpop.f32.mrb[0].mxu0
        %v1135 = vpop.f32.mrb[0].mxu0
        %v1136 = vpop.f32.mrb[0].mxu0
        %1137 = vdwg.mxu0
        %v1139 = vsel %vm760, %v1040, 0
        %v1142 = vsel %vm760, %v1044, 0
        %1144 = vmatprep.subr.bf16.mxu0 0
        %1145 = vmatpush1.bf16.xpose.msra.mxu0 %v1142
        %1146 = vmatprep.subr.bf16.mxu0 0
        %1147 = vmatpush1.bf16.xpose.msra.mxu0 0
        %1148 = vmatprep.subr.bf16.mxu0 0
        %1149 = vmatpush1.bf16.xpose.msra.mxu0 0
        %1150 = vmatprep.subr.bf16.mxu0 0
        %1151 = vmatpush1.bf16.xpose.msra.mxu0 0
        %1152 = vmatprep.subr.bf16.mxu0 0
        %1153 = vmatpush1.bf16.xpose.msra.mxu0 0
        %1154 = vmatprep.subr.bf16.mxu0 0
        %1155 = vmatpush1.bf16.xpose.msra.mxu0 0
        %1156 = vmatprep.subr.bf16.mxu0 0
        %1157 = vmatpush1.bf16.xpose.msra.mxu0 0
        %1158 = vmatprep.subr.bf16.mxu0 0
        %1159 = vmatpush1.bf16.xpose.msra.mxu0 0
        %1160 = vmatprep.subr.bf16.mxu0 0
        %1161 = vmatpush1.bf16.xpose.msra.mxu0 0
        %1162 = vmatprep.subr.bf16.mxu0 0
        %1163 = vmatpush1.bf16.xpose.msra.mxu0 0
        %1164 = vmatprep.subr.bf16.mxu0 0
        %1165 = vmatpush1.bf16.xpose.msra.mxu0 0
        %1166 = vmatprep.subr.bf16.mxu0 0
        %1167 = vmatpush1.bf16.xpose.msra.mxu0 0
        %1168 = vmatprep.subr.bf16.mxu0 0
        %1169 = vmatpush1.bf16.xpose.msra.mxu0 0
        %1170 = vmatprep.subr.bf16.mxu0 0
        %1171 = vmatpush1.bf16.xpose.msra.mxu0 0
        %1172 = vmatprep.subr.bf16.mxu0 0
        %1173 = vmatpush1.bf16.xpose.msra.mxu0 0
        %1174 = vmatprep.subr.bf16.mxu0 0
        %1175 = vmatpush1.bf16.xpose.msra.mxu0 0
        %1176 = vmatprep.mubr.bf16.mxu0 0
        %1177 = vmatmul.mubr.bf16.gmra.mrb[0].mxu0 %v1139
        %v1178 = vpop.f32.mrb[0].mxu0
        %v1179 = vadd.f32 0.0, %v1178
        %v1180 = vpop.f32.mrb[0].mxu0
        %v1181 = vpop.f32.mrb[0].mxu0
        %v1182 = vpop.f32.mrb[0].mxu0
        %1183 = vdwg.mxu0
        %v1185 = vsel %vm760, %v1041, 0
        %v1188 = vsel %vm760, %v1045, 0
        %1190 = vmatprep.subr.bf16.mxu0 0
        %1191 = vmatpush1.bf16.xpose.msra.mxu0 %v1188
        %1192 = vmatprep.subr.bf16.mxu0 0
        %1193 = vmatpush1.bf16.xpose.msra.mxu0 0
        %1194 = vmatprep.subr.bf16.mxu0 0
        %1195 = vmatpush1.bf16.xpose.msra.mxu0 0
        %1196 = vmatprep.subr.bf16.mxu0 0
        %1197 = vmatpush1.bf16.xpose.msra.mxu0 0
        %1198 = vmatprep.subr.bf16.mxu0 0
        %1199 = vmatpush1.bf16.xpose.msra.mxu0 0
        %1200 = vmatprep.subr.bf16.mxu0 0
        %1201 = vmatpush1.bf16.xpose.msra.mxu0 0
        %1202 = vmatprep.subr.bf16.mxu0 0
        %1203 = vmatpush1.bf16.xpose.msra.mxu0 0
        %1204 = vmatprep.subr.bf16.mxu0 0
        %1205 = vmatpush1.bf16.xpose.msra.mxu0 0
        %1206 = vmatprep.subr.bf16.mxu0 0
        %1207 = vmatpush1.bf16.xpose.msra.mxu0 0
        %1208 = vmatprep.subr.bf16.mxu0 0
        %1209 = vmatpush1.bf16.xpose.msra.mxu0 0
        %1210 = vmatprep.subr.bf16.mxu0 0
        %1211 = vmatpush1.bf16.xpose.msra.mxu0 0
        %1212 = vmatprep.subr.bf16.mxu0 0
        %1213 = vmatpush1.bf16.xpose.msra.mxu0 0
        %1214 = vmatprep.subr.bf16.mxu0 0
        %1215 = vmatpush1.bf16.xpose.msra.mxu0 0
        %1216 = vmatprep.subr.bf16.mxu0 0
        %1217 = vmatpush1.bf16.xpose.msra.mxu0 0
        %1218 = vmatprep.subr.bf16.mxu0 0
        %1219 = vmatpush1.bf16.xpose.msra.mxu0 0
        %1220 = vmatprep.subr.bf16.mxu0 0
        %1221 = vmatpush1.bf16.xpose.msra.mxu0 0
        %1222 = vmatprep.mubr.bf16.mxu0 0
        %1223 = vmatmul.mubr.bf16.gmra.mrb[0].mxu0 %v1185
        %v1224 = vpop.f32.mrb[0].mxu0
        %v1225 = vadd.f32 0.0, %v1224
        %v1226 = vpop.f32.mrb[0].mxu0
        %v1227 = vpop.f32.mrb[0].mxu0
        %v1228 = vpop.f32.mrb[0].mxu0
        %1229 = vdwg.mxu0
        %v1230 = vpack.c.bf16 %v1133, %v1087
        %v1231 = vpack.c.bf16 %v1225, %v1179
        %v1232 = vld [vmem:[%s6] sm:$0xf]
        %v1233 = vld [vmem:[%s6 + $0x4] sm:$0xf]
        %v1234 = vld [vmem:[%s6 + $0x8] sm:$0xf]
        %v1235 = vld [vmem:[%s6 + $0xc] sm:$0xf]
        %v1236 = vld [vmem:[%s7] sm:$0x1]
        %v1238 = vlaneseq
        %v1239 = vshrl.u32 %v1238, 7
        %v1240 = vsub.s32 0, %v1239
        %v1241 = vrot.slane %v1236, %v1240
        %1243 = vxpose.xlu0.c.b16.start [1/8] %v1230, 128
        %1244 = vxpose.xlu0.c.b16.cont [2/8] %v1231, 128
        %1245 = vxpose.xlu0.c.b16.cont [3/8] 0, 128
        %1246 = vxpose.xlu0.c.b16.cont [4/8] 0, 128
        %1247 = vxpose.xlu0.c.b16.cont [5/8] 0, 128
        %1248 = vxpose.xlu0.c.b16.cont [6/8] 0, 128
        %1249 = vxpose.xlu0.c.b16.cont [7/8] 0, 128
        %1250 = vxpose.xlu0.c.b16.end [8/8] 0, 128
        %v1251 = vpop.trf.xlu0
        %v1252 = vpop.trf.xlu0
        %v1253 = vpop.trf.xlu0
        %v1254 = vpop.trf.xlu0
        %v1255 = vpop.trf.xlu0
        %v1256 = vpop.trf.xlu0
        %v1257 = vpop.trf.xlu0
        %v1258 = vpop.trf.xlu0
        %v1263 = vunpack.c.l.b16 %v1232
        %v1264 = vunpack.c.l.b16 %v1233
        %v1265 = vunpack.c.l.b16 %v1234
        %v1266 = vunpack.c.l.b16 %v1235
        %v1267 = vpack.c.b16 %v1264, %v1263
        %v1268 = vpack.c.b16 %v1266, %v1265
        %v1272 = vsel %vm508, %v1251, 0
        %1274 = vmatprep.subr.bf16.mxu0 0
        %1275 = vmatpush1.bf16.msra.mxu0 %v1267
        %1276 = vmatprep.subr.bf16.mxu0 0
        %1277 = vmatpush1.bf16.msra.mxu0 %v1268
        %1278 = vmatprep.subr.bf16.mxu0 0
        %1279 = vmatpush1.bf16.msra.mxu0 0
        %1280 = vmatprep.subr.bf16.mxu0 0
        %1281 = vmatpush1.bf16.msra.mxu0 0
        %1282 = vmatprep.subr.bf16.mxu0 0
        %1283 = vmatpush1.bf16.msra.mxu0 0
        %1284 = vmatprep.subr.bf16.mxu0 0
        %1285 = vmatpush1.bf16.msra.mxu0 0
        %1286 = vmatprep.subr.bf16.mxu0 0
        %1287 = vmatpush1.bf16.msra.mxu0 0
        %1288 = vmatprep.subr.bf16.mxu0 0
        %1289 = vmatpush1.bf16.msra.mxu0 0
        %1290 = vmatprep.subr.bf16.mxu0 0
        %1291 = vmatpush1.bf16.msra.mxu0 0
        %1292 = vmatprep.subr.bf16.mxu0 0
        %1293 = vmatpush1.bf16.msra.mxu0 0
        %1294 = vmatprep.subr.bf16.mxu0 0
        %1295 = vmatpush1.bf16.msra.mxu0 0
        %1296 = vmatprep.subr.bf16.mxu0 0
        %1297 = vmatpush1.bf16.msra.mxu0 0
        %1298 = vmatprep.subr.bf16.mxu0 0
        %1299 = vmatpush1.bf16.msra.mxu0 0
        %1300 = vmatprep.subr.bf16.mxu0 0
        %1301 = vmatpush1.bf16.msra.mxu0 0
        %1302 = vmatprep.subr.bf16.mxu0 0
        %1303 = vmatpush1.bf16.msra.mxu0 0
        %1304 = vmatprep.subr.bf16.mxu0 0
        %1305 = vmatpush1.bf16.msra.mxu0 0
        %1306 = vmatprep.mubr.bf16.mxu0 0
        %1307 = vmatmul.mubr.bf16.gmra.mrb[0].mxu0 %v1272
        %v1308 = vpop.f32.mrb[0].mxu0
        %v1309 = vadd.f32 %v1241, %v1308
        %v1310 = vpop.f32.mrb[0].mxu0
        %v1311 = vpop.f32.mrb[0].mxu0
        %v1312 = vpop.f32.mrb[0].mxu0
        %1313 = vdwg.mxu0
        %v1314 = vadd.f32 %v506, %v1309
        %v1315 = vsel %vm508, %v1314, 0.0
        %1316 = vadd.xlane.f32.xlu0 %v1315
        %v1317 = vpop.xlane.xlu0 %1316
        %v1318 = vmul.f32 %v1317, %v512
        %v1319 = vsub.f32 %v1314, %v1318
        %v1320 = vmul.f32 %v1319, %v1319
        %v1321 = vsel %vm508, %v1320, 0.0
        %1322 = vadd.xlane.f32.xlu0 %v1321
        %v1323 = vpop.xlane.xlu0 %1322
        %v1324 = vmul.f32 %v1323, %v512
        %v1325 = vadd.f32 %v1324, 1e-05
        %v1326 = vrsqrt.pop %v1325
        %v1327 = vmul.f32 %v1319, %v1326
        %v1328 = vld [vmem:[%s8] sm:$0x1]
        %v1330 = vlaneseq
        %v1331 = vshrl.u32 %v1330, 7
        %v1332 = vsub.s32 0, %v1331
        %v1333 = vrot.slane %v1328, %v1332
        %v1335 = vmul.f32 %v1327, %v1333
        %v1336 = vld [vmem:[%s9] sm:$0x1]
        %v1338 = vlaneseq
        %v1339 = vshrl.u32 %v1338, 7
        %v1340 = vsub.s32 0, %v1339
        %v1341 = vrot.slane %v1336, %v1340
        %v1343 = vadd.f32 %v1335, %v1341
        %v1344 = vpack.c.bf16 %v1343, %v1343
        %v1345 = vld [vmem:[%s10] sm:$0xf]
        %v1346 = vld [vmem:[%s10 + $0x4] sm:$0xf]
        %v1347 = vld [vmem:[%s10 + $0x8] sm:$0xf]
        %v1348 = vld [vmem:[%s10 + $0xc] sm:$0xf]
        %v1349 = vld [vmem:[%s11] sm:$0x1]
        %v1351 = vlaneseq
        %v1352 = vshrl.u32 %v1351, 7
        %v1353 = vsub.s32 0, %v1352
        %v1354 = vrot.slane %v1349, %v1353
        %v1360 = vunpack.c.l.b16 %v1345
        %v1361 = vunpack.c.l.b16 %v1346
        %v1362 = vunpack.c.l.b16 %v1347
        %v1363 = vunpack.c.l.b16 %v1348
        %v1364 = vpack.c.b16 %v1361, %v1360
        %v1365 = vpack.c.b16 %v1363, %v1362
        %v1369 = vsel %vm508, %v1344, 0
        %1371 = vmatprep.subr.bf16.mxu0 0
        %1372 = vmatpush1.bf16.msra.mxu0 %v1364
        %1373 = vmatprep.subr.bf16.mxu0 0
        %1374 = vmatpush1.bf16.msra.mxu0 %v1365
        %1375 = vmatprep.subr.bf16.mxu0 0
        %1376 = vmatpush1.bf16.msra.mxu0 0
        %1377 = vmatprep.subr.bf16.mxu0 0
        %1378 = vmatpush1.bf16.msra.mxu0 0
        %1379 = vmatprep.subr.bf16.mxu0 0
        %1380 = vmatpush1.bf16.msra.mxu0 0
        %1381 = vmatprep.subr.bf16.mxu0 0
        %1382 = vmatpush1.bf16.msra.mxu0 0
        %1383 = vmatprep.subr.bf16.mxu0 0
        %1384 = vmatpush1.bf16.msra.mxu0 0
        %1385 = vmatprep.subr.bf16.mxu0 0
        %1386 = vmatpush1.bf16.msra.mxu0 0
        %1387 = vmatprep.subr.bf16.mxu0 0
        %1388 = vmatpush1.bf16.msra.mxu0 0
        %1389 = vmatprep.subr.bf16.mxu0 0
        %1390 = vmatpush1.bf16.msra.mxu0 0
        %1391 = vmatprep.subr.bf16.mxu0 0
        %1392 = vmatpush1.bf16.msra.mxu0 0
        %1393 = vmatprep.subr.bf16.mxu0 0
        %1394 = vmatpush1.bf16.msra.mxu0 0
        %1395 = vmatprep.subr.bf16.mxu0 0
        %1396 = vmatpush1.bf16.msra.mxu0 0
        %1397 = vmatprep.subr.bf16.mxu0 0
        %1398 = vmatpush1.bf16.msra.mxu0 0
        %1399 = vmatprep.subr.bf16.mxu0 0
        %1400 = vmatpush1.bf16.msra.mxu0 0
        %1401 = vmatprep.subr.bf16.mxu0 0
        %1402 = vmatpush1.bf16.msra.mxu0 0
        %1403 = vmatprep.mubr.bf16.mxu0 0
        %1404 = vmatmul.mubr.bf16.gmra.mrb[0].mxu0 %v1369
        %v1405 = vpop.f32.mrb[0].mxu0
        %v1406 = vadd.f32 %v1354, %v1405
        %v1407 = vpop.f32.mrb[0].mxu0
        %v1408 = vpop.f32.mrb[0].mxu0
        %v1409 = vpop.f32.mrb[0].mxu0
        %1410 = vdwg.mxu0
        %v1411 = vmul.f32 %v1406, 0.5
        %v1412 = vmul.f32 %v1406, 0.70710677
        %v1413 = verf.f32.pop %v1412
        %v1414 = vadd.f32 %v1413, 1.0
        %v1415 = vmul.f32 %v1411, %v1414
        %v1416 = vpack.c.bf16 %v1415, %v1415
        %v1417 = vld [vmem:[%s12] sm:$0xf]
        %v1418 = vld [vmem:[%s12 + $0x4] sm:$0xf]
        %v1419 = vld [vmem:[%s12 + $0x8] sm:$0xf]
        %v1420 = vld [vmem:[%s12 + $0xc] sm:$0xf]
        %v1421 = vld [vmem:[%s12 + $0x10] sm:$0xf]
        %v1422 = vld [vmem:[%s12 + $0x14] sm:$0xf]
        %v1423 = vld [vmem:[%s12 + $0x18] sm:$0xf]
        %v1424 = vld [vmem:[%s12 + $0x1c] sm:$0xf]
        %v1425 = vld [vmem:[%s12 + $0x20] sm:$0xf]
        %v1426 = vld [vmem:[%s12 + $0x24] sm:$0xf]
        %v1427 = vld [vmem:[%s12 + $0x28] sm:$0xf]
        %v1428 = vld [vmem:[%s12 + $0x2c] sm:$0xf]
        %v1429 = vld [vmem:[%s12 + $0x30] sm:$0xf]
        %v1430 = vld [vmem:[%s12 + $0x34] sm:$0xf]
        %v1431 = vld [vmem:[%s12 + $0x38] sm:$0xf]
        %v1432 = vld [vmem:[%s12 + $0x3c] sm:$0xf]
        %v1433 = vld [vmem:[%s13] sm:$0x1]
        %v1435 = vlaneseq
        %v1436 = vshrl.u32 %v1435, 7
        %v1437 = vsub.s32 0, %v1436
        %v1438 = vrot.slane %v1433, %v1437
        %v1456 = vunpack.c.l.b16 %v1417
        %v1457 = vunpack.c.l.b16 %v1418
        %v1458 = vunpack.c.l.b16 %v1419
        %v1459 = vunpack.c.l.b16 %v1420
        %v1460 = vunpack.c.l.b16 %v1421
        %v1461 = vunpack.c.l.b16 %v1422
        %v1462 = vunpack.c.l.b16 %v1423
        %v1463 = vunpack.c.l.b16 %v1424
        %v1464 = vunpack.c.l.b16 %v1425
        %v1465 = vunpack.c.l.b16 %v1426
        %v1466 = vunpack.c.l.b16 %v1427
        %v1467 = vunpack.c.l.b16 %v1428
        %v1468 = vunpack.c.l.b16 %v1429
        %v1469 = vunpack.c.l.b16 %v1430
        %v1470 = vunpack.c.l.b16 %v1431
        %v1471 = vunpack.c.l.b16 %v1432
        %v1472 = vpack.c.b16 %v1457, %v1456
        %v1473 = vpack.c.b16 %v1459, %v1458
        %v1474 = vpack.c.b16 %v1461, %v1460
        %v1475 = vpack.c.b16 %v1463, %v1462
        %v1476 = vpack.c.b16 %v1465, %v1464
        %v1477 = vpack.c.b16 %v1467, %v1466
        %v1478 = vpack.c.b16 %v1469, %v1468
        %v1479 = vpack.c.b16 %v1471, %v1470
        %1488 = vmatprep.subr.bf16.mxu0 0
        %1489 = vmatpush1.bf16.msra.mxu0 %v1472
        %1490 = vmatprep.subr.bf16.mxu0 0
        %1491 = vmatpush1.bf16.msra.mxu0 %v1473
        %1492 = vmatprep.subr.bf16.mxu0 0
        %1493 = vmatpush1.bf16.msra.mxu0 %v1474
        %1494 = vmatprep.subr.bf16.mxu0 0
        %1495 = vmatpush1.bf16.msra.mxu0 %v1475
        %1496 = vmatprep.subr.bf16.mxu0 0
        %1497 = vmatpush1.bf16.msra.mxu0 %v1476
        %1498 = vmatprep.subr.bf16.mxu0 0
        %1499 = vmatpush1.bf16.msra.mxu0 %v1477
        %1500 = vmatprep.subr.bf16.mxu0 0
        %1501 = vmatpush1.bf16.msra.mxu0 %v1478
        %1502 = vmatprep.subr.bf16.mxu0 0
        %1503 = vmatpush1.bf16.msra.mxu0 %v1479
        %1504 = vmatprep.subr.bf16.mxu0 0
        %1505 = vmatpush1.bf16.msra.mxu0 0
        %1506 = vmatprep.subr.bf16.mxu0 0
        %1507 = vmatpush1.bf16.msra.mxu0 0
        %1508 = vmatprep.subr.bf16.mxu0 0
        %1509 = vmatpush1.bf16.msra.mxu0 0
        %1510 = vmatprep.subr.bf16.mxu0 0
        %1511 = vmatpush1.bf16.msra.mxu0 0
        %1512 = vmatprep.subr.bf16.mxu0 0
        %1513 = vmatpush1.bf16.msra.mxu0 0
        %1514 = vmatprep.subr.bf16.mxu0 0
        %1515 = vmatpush1.bf16.msra.mxu0 0
        %1516 = vmatprep.subr.bf16.mxu0 0
        %1517 = vmatpush1.bf16.msra.mxu0 0
        %1518 = vmatprep.subr.bf16.mxu0 0
        %1519 = vmatpush1.bf16.msra.mxu0 0
        %1520 = vmatprep.mubr.bf16.mxu0 0
        %1521 = vmatmul.mubr.bf16.gmra.mrb[0].mxu0 %v1416
        %v1522 = vpop.f32.mrb[0].mxu0
        %v1523 = vadd.f32 %v1438, %v1522
        %v1524 = vpop.f32.mrb[0].mxu0
        %v1525 = vpop.f32.mrb[0].mxu0
        %v1526 = vpop.f32.mrb[0].mxu0
        %1527 = vdwg.mxu0
        %v1528 = vadd.f32 %v1314, %v1523
        %1529 = vst.msk [vmem:[%s493] sm:$0xff] %vm508, %v1528
        %s1530 = sand.u32 %s356, 1
        %s1531 = scalar_lea.sflag [#allocation3], %s1530
        %s1532 = sand.u32 %s356, 1
        %s1533 = smul.addr %s1532, 8
        %s1534 = scalar_lea.vmem [#allocation2], %s1533
        // Predicated region
        $region77: #{tpu_custom_call.1} parent=75 // pred_check
          %p1535 = pneg %p366
        $region78: #{tpu_custom_call.1} parent=75 // pred_check_branch
          %1537 = sbr.rel (%p1535) target = $region80
        $region79: #{tpu_custom_call.1} parent=75 // pred_region
          %s1539 = ssub.s32 128, 128
          %1540 = vsyncadd %s1531, %s1539
          %s1541 = sadd.s32 %s33, %s32
          %s1542 = smul.addr %s1541, 128
          %s1543 = scalar_lea.hbm %s14, %s1542
          %s1545 = sshll.u32 %s1534, 4
          %s1546 = int_to_ptr.vmem [resolvable:$true] %s1545
          %1548 = dma.vmem_to_hbm [thread:$0]  %s1546, 128, %s1543, %s1531
        $region80: #{tpu_custom_call.1} parent=75 // pred_fallthru
          _
      $region76: #{tpu_custom_call.1} parent=5 // pred_fallthru
        _
      %p1549 = scmp.le.s32.totalorder 2, %s23
      // Predicated region
      $region81: #{tpu_custom_call.1} parent=5 // pred_check
        %p1550 = pneg %p1549
      $region82: #{tpu_custom_call.1} parent=5 // pred_check_branch
        %1552 = sbr.rel (%p1550) target = $region84
      $region83: #{tpu_custom_call.1} parent=5 // pred_region
        %s1553 = ssub.s32 %s23, 2
        // Predicated region
        $region85: #{tpu_custom_call.1} parent=83 // pred_check
          %p1554 = pneg %p372
        $region86: #{tpu_custom_call.1} parent=83 // pred_check_branch
          %1556 = sbr.rel (%p1554) target = $region88
        $region87: #{tpu_custom_call.1} parent=83 // pred_region
          %s1557 = sand.u32 %s357, 1
          %s1558 = scalar_lea.sflag [#allocation3], %s1557
          %s1559 = sand.u32 %s357, 1
          %s1560 = smul.addr %s1559, 8
          %s1561 = scalar_lea.vmem [#allocation2], %s1560
          %1562 = dma.done %s1558, 128
        $region88: #{tpu_custom_call.1} parent=83 // pred_fallthru
          _
      $region84: #{tpu_custom_call.1} parent=5 // pred_fallthru
        _
    $region6: #{tpu_custom_call.1} parent=1 // loop_footer
      %s27 = sadd.s32 1, %s23
    $region7: #{tpu_custom_call.1} parent=1 // loop_footer_branch
      %22 = sbr.rel target = $region3
    $region8: #{tpu_custom_call.1} parent=1 // loop_exit
      _
    %1563 = vsyncpa [#allocation3], 1
    %s1564 = scalar_lea.sflag [#allocation3], 1
    %1565 = vsyncpa %s1564, 1

</llo_original>
